<compile_context>
chip_gen: v6e
topology: v6e:2x2x1
jax: 0.10.0
libtpu: 0.0.40
codegen_flags: <defaults>
</compile_context>

<pallas_src>
import math
import functools

import jax
import jax.numpy as jnp
from jax import lax
from jax.experimental import pallas as pl
from jax.experimental.pallas import tpu as pltpu

EPS_IOU = 1e-7       # eps used inside bbox_iou (torch default)


def _tal_kernel(ps_t_ref, pba_ref, anc_ref, gr_ref, gc_ref,
                tl_ref, tb_t_ref, ts_t_ref, fg_ref, tgi_ref,
                *, topk, eps, approx_recip):
    f32 = jnp.float32
    C = ps_t_ref.shape[1]
    A = ps_t_ref.shape[2]
    M = gr_ref.shape[1]

    def recip(x):
        return pl.reciprocal(x, approx=True) if approx_recip else 1.0 / x

    ps_t = ps_t_ref[0]                  # (C, A)  pd_scores (classes on sublanes)
    pba = pba_ref[0]                    # (5, A)  [x1, y1, x2, y2, arctan(w2/h2)]
    anc = anc_ref[...]                  # (2, A)  anchor centers (transposed)
    gr = gr_ref[0]                      # (M, 8)  [label, x1, y1, x2, y2, mask_gt, atan, 0]
    gc = gc_ref[0]                      # (8, M)  same data transposed (for MXU gather)

    gl_i = gr[:, 0:1].astype(jnp.int32)                                   # (M, 1)
    gx1 = gr[:, 1:2]; gy1 = gr[:, 2:3]; gx2 = gr[:, 3:4]; gy2 = gr[:, 4:5]
    mg = gr[:, 5:6]                                                       # (M, 1)
    atan_gt = gr[:, 6:7]                                                  # (M, 1)

    px1 = pba[0:1, :]; py1 = pba[1:2, :]; px2 = pba[2:3, :]; py2 = pba[3:4, :]
    atan_pd = pba[4:5, :]                                                 # (1, A)

    # ---- bbox_scores[m, a] = pd_scores[a, gt_labels[m]]  (one-hot matmul on MXU) ----
    cls_iota_mc = lax.broadcasted_iota(jnp.int32, (M, C), 1)
    onehot_gt = (cls_iota_mc == gl_i).astype(f32)                         # (M, C)
    bbox_scores = jnp.dot(onehot_gt, ps_t, preferred_element_type=f32)    # (M, A)

    # ---- CIoU(gt, pred), xywh=False ----
    w1 = gx2 - gx1
    h1 = gy2 - gy1 + EPS_IOU
    w2 = px2 - px1
    h2 = py2 - py1 + EPS_IOU
    iw = jnp.maximum(jnp.minimum(gx2, px2) - jnp.maximum(gx1, px1), 0.0)  # (M, A)
    ih = jnp.maximum(jnp.minimum(gy2, py2) - jnp.maximum(gy1, py1), 0.0)
    inter = iw * ih
    union = (w1 * h1) + (w2 * h2) - inter + EPS_IOU
    iou = inter * recip(union)
    cw = jnp.maximum(gx2, px2) - jnp.minimum(gx1, px1)
    ch = jnp.maximum(gy2, py2) - jnp.minimum(gy1, py1)
    c2 = cw * cw + ch * ch + EPS_IOU
    dx = (px1 + px2) - (gx1 + gx2)     # small-shape sums first (strength reduction)
    dy = (py1 + py2) - (gy1 + gy2)
    rho2 = (dx * dx + dy * dy) * 0.25
    dv = atan_pd - atan_gt                                                # (M, A)
    v = (4.0 / (math.pi ** 2)) * (dv * dv)
    alpha_c = v * recip(v - iou + (1.0 + EPS_IOU))
    ciou = iou - (rho2 * recip(c2) + v * alpha_c)
    overlaps = jnp.maximum(ciou, 0.0)                                     # (M, A)

    # ---- align_metric = score**alpha * overlaps**beta  (alpha=1, beta=6 hard-coded) ----
    o2 = overlaps * overlaps
    align_metric = bbox_scores * (o2 * o2 * o2)                           # (M, A)

    # ---- select_candidates_in_gts: anchor center strictly inside gt box ----
    xc = anc[0:1, :]; yc = anc[1:2, :]                                    # (1, A)
    delta_min = jnp.minimum(jnp.minimum(xc - gx1, yc - gy1),
                            jnp.minimum(gx2 - xc, gy2 - yc))              # (M, A)
    in_gts = delta_min > eps                                              # (M, A) bool

    # ---- select_topk_candidates: iterative arg-max (ties -> lowest anchor index) ----
    # TODO(synk): a fused single-reduce argmax would halve the XLU lane reductions in
    # this loop; kept as max + masked-index-min for guaranteed Mosaic lowering.
    iota_a = lax.broadcasted_iota(jnp.int32, (M, A), 1)                   # int32

    def topk_body(_, carry):
        work, sel = carry
        cur_max = jnp.max(work, axis=1, keepdims=True)                    # (M, 1)
        masked_idx = jnp.where(work == cur_max, iota_a, A)                # (M, A) int32
        first = jnp.min(masked_idx, axis=1, keepdims=True)                # (M, 1)
        pick = masked_idx == first                                        # one True per row
        sel = jnp.where(pick, 1.0, sel)
        work = jnp.where(pick, -1.0, work)     # work >= 0 always, so -1 excludes
        return work, sel

    work0 = jnp.where(in_gts, align_metric, 0.0)
    sel0 = jnp.zeros((M, A), f32)
    _, sel = lax.fori_loop(0, topk, topk_body, (work0, sel0))

    mask_pos = jnp.where(in_gts, sel * mg, 0.0)                           # (M, A)

    # ---- select_highest_overlaps (applied unconditionally; no-op when no conflicts) ----
    iota_m = lax.broadcasted_iota(jnp.int32, (M, A), 0)
    fg = jnp.sum(mask_pos, axis=0, keepdims=True)                         # (1, A)
    ov_max = jnp.max(overlaps, axis=0, keepdims=True)
    ov_arg = jnp.min(jnp.where(overlaps == ov_max, iota_m, M),
                     axis=0, keepdims=True)                               # (1, A) int32
    is_max_ov = (iota_m == ov_arg).astype(f32)
    mask_pos = jnp.where(fg > 1.0, is_max_ov, mask_pos)
    fg = jnp.sum(mask_pos, axis=0, keepdims=True)

    mp_max = jnp.max(mask_pos, axis=0, keepdims=True)
    tgt_idx = jnp.min(jnp.where(mask_pos == mp_max, iota_m, M),
                      axis=0, keepdims=True)                              # (1, A) int32

    # ---- get_targets: gather labels + boxes with ONE MXU matmul ----
    assign = (iota_m == tgt_idx).astype(f32)                              # (M, A) one-hot cols
    gathered = jnp.dot(gc, assign, preferred_element_type=f32)            # (8, A)
    tl_i = (gathered[0:1, :] + 0.5).astype(jnp.int32)                     # (1, A)

    # ---- norm_align_metric and final target_scores ----
    am = align_metric * mask_pos
    pam = jnp.max(am, axis=1, keepdims=True)                              # (M, 1)
    pov = jnp.max(overlaps * mask_pos, axis=1, keepdims=True)             # (M, 1)
    ratio = pov / (pam + eps)                                             # (M, 1) tiny divide
    norm = jnp.max(am * ratio, axis=0, keepdims=True)                     # (1, A)

    cls_iota_ca = lax.broadcasted_iota(jnp.int32, (C, A), 0)
    fg_norm = jnp.where(fg > 0.0, norm, 0.0)                              # (1, A)
    ts_t = jnp.where(cls_iota_ca == tl_i, fg_norm, 0.0)                   # (C, A)

    tl_ref[0] = tl_i
    tb_t_ref[0] = gathered[1:5, :]
    ts_t_ref[0] = ts_t
    fg_ref[0] = fg
    tgi_ref[0] = tgt_idx


def task_aligned_assigner(pd_scores, pd_bboxes, anc_points, gt_labels, gt_bboxes,
                          mask_gt, *, topk=13, num_classes=80, alpha=1.0, beta=6.0,
                          eps=1e-9, approx_reciprocal=True):
    """JAX/Pallas port of TaskAlignedAssigner.forward (no-grad path)."""
    assert alpha == 1.0 and beta == 6.0, "kernel hard-codes alpha=1, beta=6 powers"
    bs, A, C = pd_scores.shape
    M = gt_bboxes.shape[1]
    assert C == num_classes

    if M == 0:  # degenerate "no gt" branch of the torch module (pure glue)
        return (jnp.full((bs, A), num_classes, jnp.int32),
                jnp.zeros_like(pd_bboxes),
                jnp.zeros_like(pd_scores),
                jnp.zeros((bs, A), bool),
                jnp.zeros((bs, A), jnp.int32))

    f32 = jnp.float32
    # NOTE: target_scores must stay lane-dense on A (C < 128 lanes would force masked
    # partial stores), so pd_scores is also fed in the (C, A) layout.
    ps_t = jnp.transpose(pd_scores, (0, 2, 1)).astype(f32)                # (bs, C, A)

    # TODO(synk): jnp.arctan has no Mosaic lowering; the O(A+M) atan terms of the CIoU
    # aspect-ratio penalty are precomputed here (glue) and packed into kernel inputs.
    pb = pd_bboxes.astype(f32)
    w2 = pb[..., 2] - pb[..., 0]
    h2 = pb[..., 3] - pb[..., 1] + EPS_IOU
    pd_atan = jnp.arctan(w2 / h2)                                         # (bs, A)
    pba = jnp.concatenate([jnp.transpose(pb, (0, 2, 1)),
                           pd_atan[:, None, :]], axis=1)                  # (bs, 5, A)

    anc_t = jnp.transpose(anc_points, (1, 0)).astype(f32)                 # (2, A)

    gb = gt_bboxes.astype(f32)
    gl_f = gt_labels.astype(f32)                                          # (bs, M, 1)
    mg_f = mask_gt.astype(f32)
    w1 = gb[..., 2] - gb[..., 0]
    h1 = gb[..., 3] - gb[..., 1] + EPS_IOU
    gt_atan = jnp.arctan(w1 / h1)[..., None]                              # (bs, M, 1)
    gt_rows = jnp.concatenate([gl_f, gb, mg_f, gt_atan,
                               jnp.zeros_like(gl_f)], axis=-1)            # (bs, M, 8)
    gt_cols = jnp.transpose(gt_rows, (0, 2, 1))                           # (bs, 8, M)

    kernel = functools.partial(_tal_kernel, topk=topk, eps=eps,
                               approx_recip=approx_reciprocal)

    out_shape = (
        jax.ShapeDtypeStruct((bs, 1, A), jnp.int32),     # target_labels
        jax.ShapeDtypeStruct((bs, 4, A), jnp.float32),   # target_bboxes (transposed)
        jax.ShapeDtypeStruct((bs, C, A), jnp.float32),   # target_scores (transposed)
        jax.ShapeDtypeStruct((bs, 1, A), jnp.float32),   # fg_mask (float)
        jax.ShapeDtypeStruct((bs, 1, A), jnp.int32),     # target_gt_idx
    )
    in_specs = [
        pl.BlockSpec((1, C, A), lambda b: (b, 0, 0)),    # pd_scores^T
        pl.BlockSpec((1, 5, A), lambda b: (b, 0, 0)),    # pd_bboxes^T + atan
        pl.BlockSpec((2, A), lambda b: (0, 0)),          # anchor centers^T
        pl.BlockSpec((1, M, 8), lambda b: (b, 0, 0)),    # packed gt (rows)
        pl.BlockSpec((1, 8, M), lambda b: (b, 0, 0)),    # packed gt (cols, for MXU)
    ]
    out_specs = (
        pl.BlockSpec((1, 1, A), lambda b: (b, 0, 0)),
        pl.BlockSpec((1, 4, A), lambda b: (b, 0, 0)),
        pl.BlockSpec((1, C, A), lambda b: (b, 0, 0)),
        pl.BlockSpec((1, 1, A), lambda b: (b, 0, 0)),
        pl.BlockSpec((1, 1, A), lambda b: (b, 0, 0)),
    )

    # VMEM budget: double-buffered per-step I/O + live (M,A)/(C,A) f32 temporaries.
    per_step_io = 4 * ((C + 5 + 2) * A + 16 * M + (7 + C) * A)
    temporaries = 4 * (30 * M * A + 3 * C * A)
    vmem_limit = int(min(max(2 * per_step_io + 2 * temporaries, 32 * 1024 * 1024),
                         64 * 1024 * 1024))
    # TODO(synk): for very large A / M on v7x (64 MiB VMEM) the anchor axis should be
    # tiled with a second "arbitrary" grid axis carrying per-gt top-k running state.

    tl, tb_t, ts_t, fg, tgi = pl.pallas_call(
        kernel,
        grid=(bs,),
        in_specs=in_specs,
        out_specs=out_specs,
        out_shape=out_shape,
        compiler_params=pltpu.CompilerParams(
            dimension_semantics=("parallel",),
            vmem_limit_bytes=vmem_limit),
    )(ps_t, pba, anc_t, gt_rows, gt_cols)

    target_labels = tl[:, 0, :]                                           # (bs, A) int32
    target_bboxes = jnp.transpose(tb_t, (0, 2, 1))                        # (bs, A, 4)
    target_scores = jnp.transpose(ts_t, (0, 2, 1))                        # (bs, A, C)
    fg_mask = fg[:, 0, :] > 0.0                                           # (bs, A) bool
    target_gt_idx = tgi[:, 0, :]                                          # (bs, A) int32
    return target_labels, target_bboxes, target_scores, fg_mask, target_gt_idx


if __name__ == "__main__":
    key = jax.random.PRNGKey(0)
    bs, A, C, M = 2, 128, 16, 8          # A = num_total_anchors, M = n_max_boxes
    ks = jax.random.split(key, 8)

    # anchor centers on a 16x8 grid -> 128 anchors
    gxm, gym = jnp.meshgrid(jnp.arange(16, dtype=jnp.float32) + 0.5,
                            jnp.arange(8, dtype=jnp.float32) + 0.5, indexing="ij")
    anc_points = jnp.stack([gxm.reshape(-1), gym.reshape(-1)], axis=-1)   # (A, 2)

    pd_scores = jax.nn.sigmoid(jax.random.normal(ks[0], (bs, A, C), jnp.float32))
    wh = 0.5 + 2.5 * jax.random.uniform(ks[1], (bs, A, 2), jnp.float32)
    ctr = anc_points[None] + 0.5 * jax.random.normal(ks[2], (bs, A, 2), jnp.float32)
    pd_bboxes = jnp.concatenate([ctr - wh / 2.0, ctr + wh / 2.0], axis=-1)  # xyxy

    gt_ctr = jnp.stack([1.0 + 14.0 * jax.random.uniform(ks[3], (bs, M)),
                        1.0 + 6.0 * jax.random.uniform(ks[4], (bs, M))], axis=-1)
    gt_wh = 1.0 + 3.0 * jax.random.uniform(ks[5], (bs, M, 2))
    gt_bboxes = jnp.concatenate([gt_ctr - gt_wh / 2.0, gt_ctr + gt_wh / 2.0], axis=-1)
    gt_labels = jax.random.randint(ks[6], (bs, M, 1), 0, C, jnp.int32)
    mask_gt = (jnp.arange(M)[None, :, None] <
               jnp.array([6, 4])[:, None, None]).astype(jnp.float32)      # (bs, M, 1)

    outs = task_aligned_assigner(pd_scores, pd_bboxes, anc_points, gt_labels,
                                 gt_bboxes, mask_gt, topk=13, num_classes=C)
    outs = jax.tree_util.tree_map(jax.block_until_ready, outs)
    print("KERNEL_OK")
</pallas_src>

<mosaic_0001>
module attributes {stable_mosaic.version = 11 : i64} {
  func.func @_tal_kernel(%arg0: i32, %arg1: memref<1x16x128xf32, #tpu.memory_space<vmem>>, %arg2: memref<1x5x128xf32, #tpu.memory_space<vmem>>, %arg3: memref<2x128xf32, #tpu.memory_space<vmem>>, %arg4: memref<1x8x8xf32, #tpu.memory_space<vmem>>, %arg5: memref<1x8x8xf32, #tpu.memory_space<vmem>>, %arg6: memref<1x1x128xi32, #tpu.memory_space<vmem>>, %arg7: memref<1x4x128xf32, #tpu.memory_space<vmem>>, %arg8: memref<1x16x128xf32, #tpu.memory_space<vmem>>, %arg9: memref<1x1x128xf32, #tpu.memory_space<vmem>>, %arg10: memref<1x1x128xi32, #tpu.memory_space<vmem>>) attributes {dimension_semantics = [#tpu.dimension_semantics<parallel>], iteration_bounds = array<i64: 2>, scalar_prefetch = 0 : i64, scratch_operands = 0 : i64, tpu.core_type = #tpu.core_type<tc>, window_params = [{transform_indices = @transform_0, window_bounds = array<i64: 1, 16, 128>}, {transform_indices = @transform_1, window_bounds = array<i64: 1, 5, 128>}, {pipeline_mode = #tpu.pipeline_mode<synchronous>, transform_indices = @transform_2, window_bounds = array<i64: 2, 128>}, {transform_indices = @transform_3, window_bounds = array<i64: 1, 8, 8>}, {transform_indices = @transform_4, window_bounds = array<i64: 1, 8, 8>}, {transform_indices = @transform_5, window_bounds = array<i64: 1, 1, 128>}, {transform_indices = @transform_6, window_bounds = array<i64: 1, 4, 128>}, {transform_indices = @transform_7, window_bounds = array<i64: 1, 16, 128>}, {transform_indices = @transform_8, window_bounds = array<i64: 1, 1, 128>}, {transform_indices = @transform_9, window_bounds = array<i64: 1, 1, 128>}]} {
    %c0 = arith.constant 0 : index
    %c0_0 = arith.constant 0 : index
    %c0_1 = arith.constant 0 : index
    %0 = vector.load %arg1[%c0, %c0_0, %c0_1] : memref<1x16x128xf32, #tpu.memory_space<vmem>>, vector<1x16x128xf32>
    %1 = vector.shape_cast %0 : vector<1x16x128xf32> to vector<16x128xf32>
    %c0_2 = arith.constant 0 : index
    %c0_3 = arith.constant 0 : index
    %c0_4 = arith.constant 0 : index
    %2 = vector.load %arg2[%c0_2, %c0_3, %c0_4] : memref<1x5x128xf32, #tpu.memory_space<vmem>>, vector<1x5x128xf32>
    %3 = vector.shape_cast %2 : vector<1x5x128xf32> to vector<5x128xf32>
    %c0_5 = arith.constant 0 : index
    %c0_6 = arith.constant 0 : index
    %4 = vector.load %arg3[%c0_5, %c0_6] : memref<2x128xf32, #tpu.memory_space<vmem>>, vector<2x128xf32>
    %c0_7 = arith.constant 0 : index
    %c0_8 = arith.constant 0 : index
    %c0_9 = arith.constant 0 : index
    %5 = vector.load %arg4[%c0_7, %c0_8, %c0_9] : memref<1x8x8xf32, #tpu.memory_space<vmem>>, vector<1x8x8xf32>
    %6 = vector.shape_cast %5 : vector<1x8x8xf32> to vector<8x8xf32>
    %c0_10 = arith.constant 0 : index
    %c0_11 = arith.constant 0 : index
    %c0_12 = arith.constant 0 : index
    %7 = vector.load %arg5[%c0_10, %c0_11, %c0_12] : memref<1x8x8xf32, #tpu.memory_space<vmem>>, vector<1x8x8xf32>
    %8 = vector.shape_cast %7 : vector<1x8x8xf32> to vector<8x8xf32>
    %9 = vector.extract_strided_slice %6 {offsets = [0, 0], sizes = [8, 1], strides = [1, 1]} : vector<8x8xf32> to vector<8x1xf32>
    %10 = arith.fptosi %9 : vector<8x1xf32> to vector<8x1xi32>
    %11 = vector.extract_strided_slice %6 {offsets = [0, 1], sizes = [8, 1], strides = [1, 1]} : vector<8x8xf32> to vector<8x1xf32>
    %12 = vector.extract_strided_slice %6 {offsets = [0, 2], sizes = [8, 1], strides = [1, 1]} : vector<8x8xf32> to vector<8x1xf32>
    %13 = vector.extract_strided_slice %6 {offsets = [0, 3], sizes = [8, 1], strides = [1, 1]} : vector<8x8xf32> to vector<8x1xf32>
    %14 = vector.extract_strided_slice %6 {offsets = [0, 4], sizes = [8, 1], strides = [1, 1]} : vector<8x8xf32> to vector<8x1xf32>
    %15 = vector.extract_strided_slice %6 {offsets = [0, 5], sizes = [8, 1], strides = [1, 1]} : vector<8x8xf32> to vector<8x1xf32>
    %16 = vector.extract_strided_slice %6 {offsets = [0, 6], sizes = [8, 1], strides = [1, 1]} : vector<8x8xf32> to vector<8x1xf32>
    %17 = vector.extract_strided_slice %3 {offsets = [0, 0], sizes = [1, 128], strides = [1, 1]} : vector<5x128xf32> to vector<1x128xf32>
    %18 = vector.extract_strided_slice %3 {offsets = [1, 0], sizes = [1, 128], strides = [1, 1]} : vector<5x128xf32> to vector<1x128xf32>
    %19 = vector.extract_strided_slice %3 {offsets = [2, 0], sizes = [1, 128], strides = [1, 1]} : vector<5x128xf32> to vector<1x128xf32>
    %20 = vector.extract_strided_slice %3 {offsets = [3, 0], sizes = [1, 128], strides = [1, 1]} : vector<5x128xf32> to vector<1x128xf32>
    %21 = vector.extract_strided_slice %3 {offsets = [4, 0], sizes = [1, 128], strides = [1, 1]} : vector<5x128xf32> to vector<1x128xf32>
    %22 = tpu.iota {dimensions = array<i32: 1>} : vector<8x16xi32>
    %23 = vector.broadcast %10 : vector<8x1xi32> to vector<8x16xi32>
    %24 = arith.cmpi eq, %22, %23 : vector<8x16xi32>
    %25 = arith.extui %24 : vector<8x16xi1> to vector<8x16xi32>
    %26 = arith.sitofp %25 : vector<8x16xi32> to vector<8x16xf32>
    %cst = arith.constant dense<0.000000e+00> : vector<8x128xf32>
    %27 = tpu.matmul %26, %1, %cst {dimension_numbers = #tpu.dot_dimension_numbers<[1], [0], [0], [1], [0, 0, 1, 1], [], []>} : vector<8x16xf32>, vector<16x128xf32>, vector<8x128xf32> -> vector<8x128xf32>
    %28 = arith.subf %13, %11 : vector<8x1xf32>
    %29 = arith.subf %14, %12 : vector<8x1xf32>
    %cst_13 = arith.constant 1.000000e-07 : f32
    %30 = vector.broadcast %cst_13 : f32 to vector<8x1xf32>
    %31 = arith.addf %29, %30 : vector<8x1xf32>
    %32 = arith.subf %19, %17 : vector<1x128xf32>
    %33 = arith.subf %20, %18 : vector<1x128xf32>
    %cst_14 = arith.constant 1.000000e-07 : f32
    %34 = vector.broadcast %cst_14 : f32 to vector<1x128xf32>
    %35 = arith.addf %33, %34 : vector<1x128xf32>
    %36 = vector.broadcast %13 : vector<8x1xf32> to vector<8x128xf32>
    %37 = vector.broadcast %19 : vector<1x128xf32> to vector<8x128xf32>
    %38 = arith.minimumf %36, %37 : vector<8x128xf32>
    %39 = vector.broadcast %11 : vector<8x1xf32> to vector<8x128xf32>
    %40 = vector.broadcast %17 : vector<1x128xf32> to vector<8x128xf32>
    %41 = arith.maximumf %39, %40 : vector<8x128xf32>
    %42 = arith.subf %38, %41 : vector<8x128xf32>
    %cst_15 = arith.constant 0.000000e+00 : f32
    %43 = vector.broadcast %cst_15 : f32 to vector<8x128xf32>
    %44 = arith.maximumf %42, %43 : vector<8x128xf32>
    %45 = vector.broadcast %14 : vector<8x1xf32> to vector<8x128xf32>
    %46 = vector.broadcast %20 : vector<1x128xf32> to vector<8x128xf32>
    %47 = arith.minimumf %45, %46 : vector<8x128xf32>
    %48 = vector.broadcast %12 : vector<8x1xf32> to vector<8x128xf32>
    %49 = vector.broadcast %18 : vector<1x128xf32> to vector<8x128xf32>
    %50 = arith.maximumf %48, %49 : vector<8x128xf32>
    %51 = arith.subf %47, %50 : vector<8x128xf32>
    %cst_16 = arith.constant 0.000000e+00 : f32
    %52 = vector.broadcast %cst_16 : f32 to vector<8x128xf32>
    %53 = arith.maximumf %51, %52 : vector<8x128xf32>
    %54 = arith.mulf %44, %53 : vector<8x128xf32>
    %55 = arith.mulf %28, %31 : vector<8x1xf32>
    %56 = arith.mulf %32, %35 : vector<1x128xf32>
    %57 = vector.broadcast %55 : vector<8x1xf32> to vector<8x128xf32>
    %58 = vector.broadcast %56 : vector<1x128xf32> to vector<8x128xf32>
    %59 = arith.addf %57, %58 : vector<8x128xf32>
    %60 = arith.subf %59, %54 : vector<8x128xf32>
    %cst_17 = arith.constant 1.000000e-07 : f32
    %61 = vector.broadcast %cst_17 : f32 to vector<8x128xf32>
    %62 = arith.addf %60, %61 : vector<8x128xf32>
    %63 = tpu.reciprocal %62 {approx = true} : vector<8x128xf32> -> vector<8x128xf32>
    %64 = arith.mulf %54, %63 : vector<8x128xf32>
    %65 = vector.broadcast %13 : vector<8x1xf32> to vector<8x128xf32>
    %66 = vector.broadcast %19 : vector<1x128xf32> to vector<8x128xf32>
    %67 = arith.maximumf %65, %66 : vector<8x128xf32>
    %68 = vector.broadcast %11 : vector<8x1xf32> to vector<8x128xf32>
    %69 = vector.broadcast %17 : vector<1x128xf32> to vector<8x128xf32>
    %70 = arith.minimumf %68, %69 : vector<8x128xf32>
    %71 = arith.subf %67, %70 : vector<8x128xf32>
    %72 = vector.broadcast %14 : vector<8x1xf32> to vector<8x128xf32>
    %73 = vector.broadcast %20 : vector<1x128xf32> to vector<8x128xf32>
    %74 = arith.maximumf %72, %73 : vector<8x128xf32>
    %75 = vector.broadcast %12 : vector<8x1xf32> to vector<8x128xf32>
    %76 = vector.broadcast %18 : vector<1x128xf32> to vector<8x128xf32>
    %77 = arith.minimumf %75, %76 : vector<8x128xf32>
    %78 = arith.subf %74, %77 : vector<8x128xf32>
    %79 = arith.mulf %71, %71 : vector<8x128xf32>
    %80 = arith.mulf %78, %78 : vector<8x128xf32>
    %81 = arith.addf %79, %80 : vector<8x128xf32>
    %cst_18 = arith.constant 1.000000e-07 : f32
    %82 = vector.broadcast %cst_18 : f32 to vector<8x128xf32>
    %83 = arith.addf %81, %82 : vector<8x128xf32>
    %84 = arith.addf %17, %19 : vector<1x128xf32>
    %85 = arith.addf %11, %13 : vector<8x1xf32>
    %86 = vector.broadcast %84 : vector<1x128xf32> to vector<8x128xf32>
    %87 = vector.broadcast %85 : vector<8x1xf32> to vector<8x128xf32>
    %88 = arith.subf %86, %87 : vector<8x128xf32>
    %89 = arith.addf %18, %20 : vector<1x128xf32>
    %90 = arith.addf %12, %14 : vector<8x1xf32>
    %91 = vector.broadcast %89 : vector<1x128xf32> to vector<8x128xf32>
    %92 = vector.broadcast %90 : vector<8x1xf32> to vector<8x128xf32>
    %93 = arith.subf %91, %92 : vector<8x128xf32>
    %94 = arith.mulf %88, %88 : vector<8x128xf32>
    %95 = arith.mulf %93, %93 : vector<8x128xf32>
    %96 = arith.addf %94, %95 : vector<8x128xf32>
    %cst_19 = arith.constant 2.500000e-01 : f32
    %97 = vector.broadcast %cst_19 : f32 to vector<8x128xf32>
    %98 = arith.mulf %96, %97 : vector<8x128xf32>
    %99 = vector.broadcast %21 : vector<1x128xf32> to vector<8x128xf32>
    %100 = vector.broadcast %16 : vector<8x1xf32> to vector<8x128xf32>
    %101 = arith.subf %99, %100 : vector<8x128xf32>
    %102 = arith.mulf %101, %101 : vector<8x128xf32>
    %cst_20 = arith.constant 0.405284733 : f32
    %103 = vector.broadcast %cst_20 : f32 to vector<8x128xf32>
    %104 = arith.mulf %103, %102 : vector<8x128xf32>
    %105 = arith.subf %104, %64 : vector<8x128xf32>
    %cst_21 = arith.constant 1.00000012 : f32
    %106 = vector.broadcast %cst_21 : f32 to vector<8x128xf32>
    %107 = arith.addf %105, %106 : vector<8x128xf32>
    %108 = tpu.reciprocal %107 {approx = true} : vector<8x128xf32> -> vector<8x128xf32>
    %109 = arith.mulf %104, %108 : vector<8x128xf32>
    %110 = tpu.reciprocal %83 {approx = true} : vector<8x128xf32> -> vector<8x128xf32>
    %111 = arith.mulf %98, %110 : vector<8x128xf32>
    %112 = arith.mulf %104, %109 : vector<8x128xf32>
    %113 = arith.addf %111, %112 : vector<8x128xf32>
    %114 = arith.subf %64, %113 : vector<8x128xf32>
    %cst_22 = arith.constant 0.000000e+00 : f32
    %115 = vector.broadcast %cst_22 : f32 to vector<8x128xf32>
    %116 = arith.maximumf %114, %115 : vector<8x128xf32>
    %117 = arith.mulf %116, %116 : vector<8x128xf32>
    %118 = arith.mulf %117, %117 : vector<8x128xf32>
    %119 = arith.mulf %118, %117 : vector<8x128xf32>
    %120 = arith.mulf %27, %119 : vector<8x128xf32>
    %121 = vector.extract_strided_slice %4 {offsets = [0, 0], sizes = [1, 128], strides = [1, 1]} : vector<2x128xf32> to vector<1x128xf32>
    %122 = vector.extract_strided_slice %4 {offsets = [1, 0], sizes = [1, 128], strides = [1, 1]} : vector<2x128xf32> to vector<1x128xf32>
    %123 = vector.broadcast %121 : vector<1x128xf32> to vector<8x128xf32>
    %124 = vector.broadcast %11 : vector<8x1xf32> to vector<8x128xf32>
    %125 = arith.subf %123, %124 : vector<8x128xf32>
    %126 = vector.broadcast %122 : vector<1x128xf32> to vector<8x128xf32>
    %127 = vector.broadcast %12 : vector<8x1xf32> to vector<8x128xf32>
    %128 = arith.subf %126, %127 : vector<8x128xf32>
    %129 = arith.minimumf %125, %128 : vector<8x128xf32>
    %130 = vector.broadcast %13 : vector<8x1xf32> to vector<8x128xf32>
    %131 = vector.broadcast %121 : vector<1x128xf32> to vector<8x128xf32>
    %132 = arith.subf %130, %131 : vector<8x128xf32>
    %133 = vector.broadcast %14 : vector<8x1xf32> to vector<8x128xf32>
    %134 = vector.broadcast %122 : vector<1x128xf32> to vector<8x128xf32>
    %135 = arith.subf %133, %134 : vector<8x128xf32>
    %136 = arith.minimumf %132, %135 : vector<8x128xf32>
    %137 = arith.minimumf %129, %136 : vector<8x128xf32>
    %cst_23 = arith.constant 9.99999971E-10 : f32
    %138 = vector.broadcast %cst_23 : f32 to vector<8x128xf32>
    %139 = arith.cmpf ogt, %137, %138 : vector<8x128xf32>
    %140 = tpu.iota {dimensions = array<i32: 1>} : vector<8x128xi32>
    %cst_24 = arith.constant 0.000000e+00 : f32
    %141 = vector.broadcast %cst_24 : f32 to vector<8x128xf32>
    %142 = arith.select %139, %120, %141 : vector<8x128xi1>, vector<8x128xf32>
    %cst_25 = arith.constant 0.000000e+00 : f32
    %143 = vector.broadcast %cst_25 : f32 to vector<8x128xf32>
    %c0_i32 = arith.constant 0 : i32
    %c13_i32 = arith.constant 13 : i32
    %144 = arith.addi %c0_i32, %c13_i32 : i32
    %c1_i32 = arith.constant 1 : i32
    %145:2 = scf.for %arg11 = %c0_i32 to %144 step %c1_i32 iter_args(%arg12 = %142, %arg13 = %143) -> (vector<8x128xf32>, vector<8x128xf32>)  : i32 {
      %cst_59 = arith.constant dense<0xFF800000> : vector<8xf32>
      %229 = vector.multi_reduction <maximumf>, %arg12, %cst_59 [1] : vector<8x128xf32> to vector<8xf32>
      %230 = vector.shape_cast %229 : vector<8xf32> to vector<8x1xf32>
      %231 = vector.broadcast %230 : vector<8x1xf32> to vector<8x128xf32>
      %232 = arith.cmpf oeq, %arg12, %231 : vector<8x128xf32>
      %c128_i32 = arith.constant 128 : i32
      %233 = vector.broadcast %c128_i32 : i32 to vector<8x128xi32>
      %234 = arith.select %232, %140, %233 : vector<8x128xi1>, vector<8x128xi32>
      %cst_60 = arith.constant dense<2147483647> : vector<8xi32>
      %235 = vector.multi_reduction <minsi>, %234, %cst_60 [1] : vector<8x128xi32> to vector<8xi32>
      %236 = vector.shape_cast %235 : vector<8xi32> to vector<8x1xi32>
      %237 = vector.broadcast %236 : vector<8x1xi32> to vector<8x128xi32>
      %238 = arith.cmpi eq, %234, %237 : vector<8x128xi32>
      %cst_61 = arith.constant 1.000000e+00 : f32
      %239 = vector.broadcast %cst_61 : f32 to vector<8x128xf32>
      %240 = arith.select %238, %239, %arg13 : vector<8x128xi1>, vector<8x128xf32>
      %cst_62 = arith.constant -1.000000e+00 : f32
      %241 = vector.broadcast %cst_62 : f32 to vector<8x128xf32>
      %242 = arith.select %238, %241, %arg12 : vector<8x128xi1>, vector<8x128xf32>
      scf.yield %242, %240 : vector<8x128xf32>, vector<8x128xf32>
    }
    %146 = vector.broadcast %15 : vector<8x1xf32> to vector<8x128xf32>
    %147 = arith.mulf %145#1, %146 : vector<8x128xf32>
    %cst_26 = arith.constant 0.000000e+00 : f32
    %148 = vector.broadcast %cst_26 : f32 to vector<8x128xf32>
    %149 = arith.select %139, %147, %148 : vector<8x128xi1>, vector<8x128xf32>
    %150 = tpu.iota {dimensions = array<i32: 0>} : vector<8x128xi32>
    %cst_27 = arith.constant dense<0.000000e+00> : vector<128xf32>
    %151 = vector.multi_reduction <add>, %149, %cst_27 [0] : vector<8x128xf32> to vector<128xf32>
    %152 = vector.shape_cast %151 : vector<128xf32> to vector<1x128xf32>
    %cst_28 = arith.constant dense<0xFF800000> : vector<128xf32>
    %153 = vector.multi_reduction <maximumf>, %116, %cst_28 [0] : vector<8x128xf32> to vector<128xf32>
    %154 = vector.shape_cast %153 : vector<128xf32> to vector<1x128xf32>
    %155 = vector.broadcast %154 : vector<1x128xf32> to vector<8x128xf32>
    %156 = arith.cmpf oeq, %116, %155 : vector<8x128xf32>
    %c8_i32 = arith.constant 8 : i32
    %157 = vector.broadcast %c8_i32 : i32 to vector<8x128xi32>
    %158 = arith.select %156, %150, %157 : vector<8x128xi1>, vector<8x128xi32>
    %cst_29 = arith.constant dense<2147483647> : vector<128xi32>
    %159 = vector.multi_reduction <minsi>, %158, %cst_29 [0] : vector<8x128xi32> to vector<128xi32>
    %160 = vector.shape_cast %159 : vector<128xi32> to vector<1x128xi32>
    %161 = vector.broadcast %160 : vector<1x128xi32> to vector<8x128xi32>
    %162 = arith.cmpi eq, %150, %161 : vector<8x128xi32>
    %163 = arith.extui %162 : vector<8x128xi1> to vector<8x128xi32>
    %164 = arith.sitofp %163 : vector<8x128xi32> to vector<8x128xf32>
    %cst_30 = arith.constant 1.000000e+00 : f32
    %165 = vector.broadcast %cst_30 : f32 to vector<1x128xf32>
    %166 = arith.cmpf ogt, %152, %165 : vector<1x128xf32>
    %167 = vector.shape_cast %166 : vector<1x128xi1> to vector<1x128xi1>
    %168 = vector.broadcast %167 : vector<1x128xi1> to vector<8x128xi1>
    %169 = arith.select %168, %164, %149 : vector<8x128xi1>, vector<8x128xf32>
    %cst_31 = arith.constant dense<0.000000e+00> : vector<128xf32>
    %170 = vector.multi_reduction <add>, %169, %cst_31 [0] : vector<8x128xf32> to vector<128xf32>
    %171 = vector.shape_cast %170 : vector<128xf32> to vector<1x128xf32>
    %cst_32 = arith.constant dense<0xFF800000> : vector<128xf32>
    %172 = vector.multi_reduction <maximumf>, %169, %cst_32 [0] : vector<8x128xf32> to vector<128xf32>
    %173 = vector.shape_cast %172 : vector<128xf32> to vector<1x128xf32>
    %174 = vector.broadcast %173 : vector<1x128xf32> to vector<8x128xf32>
    %175 = arith.cmpf oeq, %169, %174 : vector<8x128xf32>
    %c8_i32_33 = arith.constant 8 : i32
    %176 = vector.broadcast %c8_i32_33 : i32 to vector<8x128xi32>
    %177 = arith.select %175, %150, %176 : vector<8x128xi1>, vector<8x128xi32>
    %cst_34 = arith.constant dense<2147483647> : vector<128xi32>
    %178 = vector.multi_reduction <minsi>, %177, %cst_34 [0] : vector<8x128xi32> to vector<128xi32>
    %179 = vector.shape_cast %178 : vector<128xi32> to vector<1x128xi32>
    %180 = vector.broadcast %179 : vector<1x128xi32> to vector<8x128xi32>
    %181 = arith.cmpi eq, %150, %180 : vector<8x128xi32>
    %182 = arith.extui %181 : vector<8x128xi1> to vector<8x128xi32>
    %183 = arith.sitofp %182 : vector<8x128xi32> to vector<8x128xf32>
    %cst_35 = arith.constant dense<0.000000e+00> : vector<8x128xf32>
    %184 = tpu.matmul %8, %183, %cst_35 {dimension_numbers = #tpu.dot_dimension_numbers<[1], [0], [0], [1], [0, 0, 1, 1], [], []>} : vector<8x8xf32>, vector<8x128xf32>, vector<8x128xf32> -> vector<8x128xf32>
    %185 = vector.extract_strided_slice %184 {offsets = [0, 0], sizes = [1, 128], strides = [1, 1]} : vector<8x128xf32> to vector<1x128xf32>
    %cst_36 = arith.constant 5.000000e-01 : f32
    %186 = vector.broadcast %cst_36 : f32 to vector<1x128xf32>
    %187 = arith.addf %185, %186 : vector<1x128xf32>
    %188 = arith.fptosi %187 : vector<1x128xf32> to vector<1x128xi32>
    %189 = arith.mulf %120, %169 : vector<8x128xf32>
    %cst_37 = arith.constant dense<0xFF800000> : vector<8xf32>
    %190 = vector.multi_reduction <maximumf>, %189, %cst_37 [1] : vector<8x128xf32> to vector<8xf32>
    %191 = vector.shape_cast %190 : vector<8xf32> to vector<8x1xf32>
    %192 = arith.mulf %116, %169 : vector<8x128xf32>
    %cst_38 = arith.constant dense<0xFF800000> : vector<8xf32>
    %193 = vector.multi_reduction <maximumf>, %192, %cst_38 [1] : vector<8x128xf32> to vector<8xf32>
    %194 = vector.shape_cast %193 : vector<8xf32> to vector<8x1xf32>
    %cst_39 = arith.constant 9.99999971E-10 : f32
    %195 = vector.broadcast %cst_39 : f32 to vector<8x1xf32>
    %196 = arith.addf %191, %195 : vector<8x1xf32>
    %197 = arith.divf %194, %196 : vector<8x1xf32>
    %198 = vector.broadcast %197 : vector<8x1xf32> to vector<8x128xf32>
    %199 = arith.mulf %189, %198 : vector<8x128xf32>
    %cst_40 = arith.constant dense<0xFF800000> : vector<128xf32>
    %200 = vector.multi_reduction <maximumf>, %199, %cst_40 [0] : vector<8x128xf32> to vector<128xf32>
    %201 = vector.shape_cast %200 : vector<128xf32> to vector<1x128xf32>
    %202 = tpu.iota {dimensions = array<i32: 0>} : vector<16x128xi32>
    %cst_41 = arith.constant 0.000000e+00 : f32
    %203 = vector.broadcast %cst_41 : f32 to vector<1x128xf32>
    %204 = arith.cmpf ogt, %171, %203 : vector<1x128xf32>
    %cst_42 = arith.constant 0.000000e+00 : f32
    %205 = vector.broadcast %cst_42 : f32 to vector<1x128xf32>
    %206 = arith.select %204, %201, %205 : vector<1x128xi1>, vector<1x128xf32>
    %207 = vector.broadcast %188 : vector<1x128xi32> to vector<16x128xi32>
    %208 = arith.cmpi eq, %202, %207 : vector<16x128xi32>
    %cst_43 = arith.constant 0.000000e+00 : f32
    %209 = vector.shape_cast %206 : vector<1x128xf32> to vector<1x128xf32>
    %210 = vector.broadcast %209 : vector<1x128xf32> to vector<16x128xf32>
    %211 = vector.broadcast %cst_43 : f32 to vector<16x128xf32>
    %212 = arith.select %208, %210, %211 : vector<16x128xi1>, vector<16x128xf32>
    %c0_44 = arith.constant 0 : index
    %c0_45 = arith.constant 0 : index
    %c0_46 = arith.constant 0 : index
    %213 = vector.load %arg6[%c0_44, %c0_45, %c0_46] : memref<1x1x128xi32, #tpu.memory_space<vmem>>, vector<1x1x128xi32>
    %214 = vector.shape_cast %213 : vector<1x1x128xi32> to vector<1x128xi32>
    %215 = vector.shape_cast %188 : vector<1x128xi32> to vector<1x1x128xi32>
    tpu.vector_store %arg6[%c0_44, %c0_45, %c0_46], %215 {strides = array<i32>} : memref<1x1x128xi32, #tpu.memory_space<vmem>>, vector<1x1x128xi32>,
    %216 = vector.extract_strided_slice %184 {offsets = [1, 0], sizes = [4, 128], strides = [1, 1]} : vector<8x128xf32> to vector<4x128xf32>
    %c0_47 = arith.constant 0 : index
    %c0_48 = arith.constant 0 : index
    %c0_49 = arith.constant 0 : index
    %217 = vector.load %arg7[%c0_47, %c0_48, %c0_49] : memref<1x4x128xf32, #tpu.memory_space<vmem>>, vector<1x4x128xf32>
    %218 = vector.shape_cast %217 : vector<1x4x128xf32> to vector<4x128xf32>
    %219 = vector.shape_cast %216 : vector<4x128xf32> to vector<1x4x128xf32>
    tpu.vector_store %arg7[%c0_47, %c0_48, %c0_49], %219 {strides = array<i32>} : memref<1x4x128xf32, #tpu.memory_space<vmem>>, vector<1x4x128xf32>,
    %c0_50 = arith.constant 0 : index
    %c0_51 = arith.constant 0 : index
    %c0_52 = arith.constant 0 : index
    %220 = vector.load %arg8[%c0_50, %c0_51, %c0_52] : memref<1x16x128xf32, #tpu.memory_space<vmem>>, vector<1x16x128xf32>
    %221 = vector.shape_cast %220 : vector<1x16x128xf32> to vector<16x128xf32>
    %222 = vector.shape_cast %212 : vector<16x128xf32> to vector<1x16x128xf32>
    tpu.vector_store %arg8[%c0_50, %c0_51, %c0_52], %222 {strides = array<i32>} : memref<1x16x128xf32, #tpu.memory_space<vmem>>, vector<1x16x128xf32>,
    %c0_53 = arith.constant 0 : index
    %c0_54 = arith.constant 0 : index
    %c0_55 = arith.constant 0 : index
    %223 = vector.load %arg9[%c0_53, %c0_54, %c0_55] : memref<1x1x128xf32, #tpu.memory_space<vmem>>, vector<1x1x128xf32>
    %224 = vector.shape_cast %223 : vector<1x1x128xf32> to vector<1x128xf32>
    %225 = vector.shape_cast %171 : vector<1x128xf32> to vector<1x1x128xf32>
    tpu.vector_store %arg9[%c0_53, %c0_54, %c0_55], %225 {strides = array<i32>} : memref<1x1x128xf32, #tpu.memory_space<vmem>>, vector<1x1x128xf32>,
    %c0_56 = arith.constant 0 : index
    %c0_57 = arith.constant 0 : index
    %c0_58 = arith.constant 0 : index
    %226 = vector.load %arg10[%c0_56, %c0_57, %c0_58] : memref<1x1x128xi32, #tpu.memory_space<vmem>>, vector<1x1x128xi32>
    %227 = vector.shape_cast %226 : vector<1x1x128xi32> to vector<1x128xi32>
    %228 = vector.shape_cast %179 : vector<1x128xi32> to vector<1x1x128xi32>
    tpu.vector_store %arg10[%c0_56, %c0_57, %c0_58], %228 {strides = array<i32>} : memref<1x1x128xi32, #tpu.memory_space<vmem>>, vector<1x1x128xi32>,
    return
  }
  func.func @transform_0(%arg0: i32) -> (i32, i32, i32) {
    %c0_i32 = arith.constant 0 : i32
    %c0_i32_0 = arith.constant 0 : i32
    %c0_i32_1 = arith.constant 0 : i32
    return %arg0, %c0_i32, %c0_i32_0 : i32, i32, i32
  }
  func.func @transform_1(%arg0: i32) -> (i32, i32, i32) {
    %c0_i32 = arith.constant 0 : i32
    %c0_i32_0 = arith.constant 0 : i32
    %c0_i32_1 = arith.constant 0 : i32
    return %arg0, %c0_i32, %c0_i32_0 : i32, i32, i32
  }
  func.func @transform_2(%arg0: i32) -> (i32, i32) {
    %c0_i32 = arith.constant 0 : i32
    %c0_i32_0 = arith.constant 0 : i32
    %c0_i32_1 = arith.constant 0 : i32
    return %c0_i32, %c0_i32_0 : i32, i32
  }
  func.func @transform_3(%arg0: i32) -> (i32, i32, i32) {
    %c0_i32 = arith.constant 0 : i32
    %c0_i32_0 = arith.constant 0 : i32
    %c0_i32_1 = arith.constant 0 : i32
    return %arg0, %c0_i32, %c0_i32_0 : i32, i32, i32
  }
  func.func @transform_4(%arg0: i32) -> (i32, i32, i32) {
    %c0_i32 = arith.constant 0 : i32
    %c0_i32_0 = arith.constant 0 : i32
    %c0_i32_1 = arith.constant 0 : i32
    return %arg0, %c0_i32, %c0_i32_0 : i32, i32, i32
  }
  func.func @transform_5(%arg0: i32) -> (i32, i32, i32) {
    %c0_i32 = arith.constant 0 : i32
    %c0_i32_0 = arith.constant 0 : i32
    %c0_i32_1 = arith.constant 0 : i32
    return %arg0, %c0_i32, %c0_i32_0 : i32, i32, i32
  }
  func.func @transform_6(%arg0: i32) -> (i32, i32, i32) {
    %c0_i32 = arith.constant 0 : i32
    %c0_i32_0 = arith.constant 0 : i32
    %c0_i32_1 = arith.constant 0 : i32
    return %arg0, %c0_i32, %c0_i32_0 : i32, i32, i32
  }
  func.func @transform_7(%arg0: i32) -> (i32, i32, i32) {
    %c0_i32 = arith.constant 0 : i32
    %c0_i32_0 = arith.constant 0 : i32
    %c0_i32_1 = arith.constant 0 : i32
    return %arg0, %c0_i32, %c0_i32_0 : i32, i32, i32
  }
  func.func @transform_8(%arg0: i32) -> (i32, i32, i32) {
    %c0_i32 = arith.constant 0 : i32
    %c0_i32_0 = arith.constant 0 : i32
    %c0_i32_1 = arith.constant 0 : i32
    return %arg0, %c0_i32, %c0_i32_0 : i32, i32, i32
  }
  func.func @transform_9(%arg0: i32) -> (i32, i32, i32) {
    %c0_i32 = arith.constant 0 : i32
    %c0_i32_0 = arith.constant 0 : i32
    %c0_i32_1 = arith.constant 0 : i32
    return %arg0, %c0_i32, %c0_i32_0 : i32, i32, i32
  }
}

</mosaic_0001>

<llo_original>
// kernel: tpu_custom_call.1
$region0: #{tpu_custom_call.1}
  #allocation0 [shape = 'u32[]', space=smem, size = 0x4, offset = 0x4, fixed_abs, tag = 'smem constant byte address 0x4 - core index']
  #allocation1 [shape = 'u32[144,128]{1,0:T(1,128)}', space=vmem, size = 0x12000, scoped, tag = 'internal scratch']
  %s0 = inlined_call_operand.hbm [shape: f32[2,16,128], index: 0, kind: input, shape index: {}]
  %s1 = inlined_call_operand.vmem [shape: f32[2,5,128], index: 1, kind: input, shape index: {}]
  %s2 = inlined_call_operand.hbm [shape: f32[2,128], index: 2, kind: input, shape index: {}]
  %s3 = inlined_call_operand.vmem [shape: f32[2,8,8], index: 3, kind: input, shape index: {}]
  %s4 = inlined_call_operand.vmem [shape: f32[2,8,8], index: 4, kind: input, shape index: {}]
  %s5 = inlined_call_operand.hbm [shape: s32[2,1,128], index: 5, kind: output, shape index: {0}]
  %s6 = inlined_call_operand.hbm [shape: f32[2,4,128], index: 6, kind: output, shape index: {1}]
  %s7 = inlined_call_operand.hbm [shape: f32[2,16,128], index: 7, kind: output, shape index: {2}]
  %s8 = inlined_call_operand.hbm [shape: f32[2,1,128], index: 8, kind: output, shape index: {3}]
  %s9 = inlined_call_operand.hbm [shape: s32[2,1,128], index: 9, kind: output, shape index: {4}]
  %10 = xla_tuple %s5, %s6, %s7, %s8, %s9
  %s11 = sld [smem:[#allocation0]]
  $region100: #{tpu_custom_call.1} parent=0
    _
  %s13 = ssub.s32 1, %s11
  %s14 = scalar_select 0, %s13, %s11
  $region1: #{tpu_custom_call.1} parent=0
    #allocation2 [shape = 'u8[16384]{0}', space=vmem, size = 0x4000, scoped, tag = 'input window, operand 0']
    #allocation3 [shape = 's32[2]{0}', space=sflag, size = 0x8, scoped, tag = 'scoped memory for tpu_custom_call.1']
    #allocation4 [shape = 's32[2]{0}', space=sflag, size = 0x8, scoped, tag = 'scoped memory for tpu_custom_call.1']
    #allocation5 [shape = 'u8[1024]{0}', space=vmem, size = 0x400, scoped, tag = 'input window, operand 2, single buffered']
    #allocation6 [shape = 's32[1]{0}', space=sflag, size = 0x4, scoped, tag = 'scoped memory for tpu_custom_call.1']
    #allocation7 [shape = 'u8[1024]{0}', space=vmem, size = 0x400, scoped, tag = 'output window, operand 0']
    #allocation8 [shape = 'u8[4096]{0}', space=vmem, size = 0x1000, scoped, tag = 'output window, operand 1']
    #allocation9 [shape = 's32[2]{0}', space=sflag, size = 0x8, scoped, tag = 'scoped memory for tpu_custom_call.1']
    #allocation10 [shape = 'u8[16384]{0}', space=vmem, size = 0x4000, scoped, tag = 'output window, operand 2']
    #allocation11 [shape = 'u8[1024]{0}', space=vmem, size = 0x400, scoped, tag = 'output window, operand 3']
    #allocation12 [shape = 's32[2]{0}', space=sflag, size = 0x8, scoped, tag = 'scoped memory for tpu_custom_call.1']
    #allocation13 [shape = 'u8[1024]{0}', space=vmem, size = 0x400, scoped, tag = 'output window, operand 4']
    %15 = vsyncpa [#allocation3], 0
    %s16 = scalar_lea.sflag [#allocation3], 1
    %17 = vsyncpa %s16, 0
    %18 = vsyncpa [#allocation6], 0
    %19 = vsyncpa [#allocation4], 0
    %s20 = scalar_lea.sflag [#allocation4], 1
    %21 = vsyncpa %s20, 0
    %22 = vsyncpa [#allocation9], 0
    %s23 = scalar_lea.sflag [#allocation9], 1
    %24 = vsyncpa %s23, 0
    %25 = vsyncpa [#allocation12], 0
    %s26 = scalar_lea.sflag [#allocation12], 1
    %27 = vsyncpa %s26, 0
    loop: start=0, step=1, limit=4
    $region2: #{tpu_custom_call.1} parent=1 // loop_pre_header
      _
    $region3: #{tpu_custom_call.1} parent=1 // loop_header
      %s29 = sphi 0, %s33
      %p30 = scmp.ge.s32.totalorder %s29, 4
      %s39 = sphi 0, %s41
      %s42 = sphi 0, %s39
      %s43 = sphi 0, %s42
      %s59 = sphi 0, %s43
      %s65 = sphi 0, %s67
      %s68 = sphi 0, %s65
      %s69 = sphi 0, %s68
      %s85 = sphi 0, %s69
      %s89 = sphi 0, %s89
      %s91 = sphi 0, %s89
      %s92 = sphi 0, %s91
      %s106 = sphi 0, %s92
      %s112 = sphi 0, %s114
      %s115 = sphi 0, %s112
      %s116 = sphi 0, %s115
      %s132 = sphi 0, %s116
      %s138 = sphi 0, %s140
      %s141 = sphi 0, %s138
      %s142 = sphi 0, %s141
      %s158 = sphi 0, %s142
      %s164 = sphi 0, %s166
      %s167 = sphi 0, %s164
      %s168 = sphi 0, %s167
      %s184 = sphi 0, %s168
      %s190 = sphi 0, %s192
      %s193 = sphi 0, %s190
      %s194 = sphi 0, %s193
      %s210 = sphi 0, %s194
      %s216 = sphi 0, %s218
      %s219 = sphi 0, %s216
      %s220 = sphi 0, %s219
      %s236 = sphi 0, %s220
      %s242 = sphi 0, %s244
      %s245 = sphi 0, %s242
      %s246 = sphi 0, %s245
      %s262 = sphi 0, %s246
      %s268 = sphi 0, %s270
      %s271 = sphi 0, %s268
      %s272 = sphi 0, %s271
      %s288 = sphi 0, %s272
    $region4: #{tpu_custom_call.1} parent=1 // loop_header_branch
      %32 = sbr.rel (%p30) target = $region8
    $region5: #{tpu_custom_call.1} parent=1 // loop_body
      %s34 = ssub.s32 %s29, 1
      %s35 = ssub.s32 %s29, 2
      %s36 = sadd.s32 %s29, 1
      %s37 = ssub.s32 %s29, %s36
      %p38 = scmp.eq.s32.totalorder %s37, 0
      %s40 = sadd.s32 %s39, 1
      %s41 = scalar_select %p38, %s39, %s40
      %p44 = pneg %p38
      %p45 = scmp.eq.s32.totalorder %s29, 1
      %p46 = por %p44, %p45
      %p47 = scmp.ne.s32.totalorder %s39, %s42
      %p48 = scmp.eq.s32.totalorder %s29, 0
      %p49 = por %p47, %p48
      %p50 = scmp.ne.s32.totalorder %s39, %s42
      %p51 = scmp.eq.s32.totalorder %s34, 1
      %p52 = por %p50, %p51
      %p53 = scmp.ne.s32.totalorder %s42, %s43
      %p54 = scmp.eq.s32.totalorder %s34, 0
      %p55 = por %p53, %p54
      %p56 = scmp.ne.s32.totalorder %s42, %s43
      %p57 = scmp.eq.s32.totalorder %s35, 1
      %p58 = por %p56, %p57
      %p60 = scmp.ne.s32.totalorder %s43, %s59
      %p61 = scmp.eq.s32.totalorder %s35, 0
      %p62 = por %p60, %p61
      %s63 = ssub.s32 %s29, %s36
      %p64 = scmp.eq.s32.totalorder %s63, 0
      %s66 = sadd.s32 %s65, 1
      %s67 = scalar_select %p64, %s65, %s66
      %p70 = pneg %p64
      %p71 = scmp.eq.s32.totalorder %s29, 1
      %p72 = por %p70, %p71
      %p73 = scmp.ne.s32.totalorder %s65, %s68
      %p74 = scmp.eq.s32.totalorder %s29, 0
      %p75 = por %p73, %p74
      %p76 = scmp.ne.s32.totalorder %s65, %s68
      %p77 = scmp.eq.s32.totalorder %s34, 1
      %p78 = por %p76, %p77
      %p79 = scmp.ne.s32.totalorder %s68, %s69
      %p80 = scmp.eq.s32.totalorder %s34, 0
      %p81 = por %p79, %p80
      %p82 = scmp.ne.s32.totalorder %s68, %s69
      %p83 = scmp.eq.s32.totalorder %s35, 1
      %p84 = por %p82, %p83
      %p86 = scmp.ne.s32.totalorder %s69, %s85
      %p87 = scmp.eq.s32.totalorder %s35, 0
      %p88 = por %p86, %p87
      %s90 = sadd.s32 %s89, 1
      %p93 = scmp.eq.s32.totalorder %s29, 1
      %p94 = scmp.ne.s32.totalorder %s89, %s91
      %p95 = scmp.eq.s32.totalorder %s29, 0
      %p96 = por %p94, %p95
      %p97 = scmp.ne.s32.totalorder %s89, %s91
      %p98 = scmp.eq.s32.totalorder %s34, 1
      %p99 = por %p97, %p98
      %p100 = scmp.ne.s32.totalorder %s91, %s92
      %p101 = scmp.eq.s32.totalorder %s34, 0
      %p102 = por %p100, %p101
      %p103 = scmp.ne.s32.totalorder %s91, %s92
      %p104 = scmp.eq.s32.totalorder %s35, 1
      %p105 = por %p103, %p104
      %p107 = scmp.ne.s32.totalorder %s92, %s106
      %p108 = scmp.eq.s32.totalorder %s35, 0
      %p109 = por %p107, %p108
      %s110 = ssub.s32 %s29, %s36
      %p111 = scmp.eq.s32.totalorder %s110, 0
      %s113 = sadd.s32 %s112, 1
      %s114 = scalar_select %p111, %s112, %s113
      %p117 = pneg %p111
      %p118 = scmp.eq.s32.totalorder %s29, 1
      %p119 = por %p117, %p118
      %p120 = scmp.ne.s32.totalorder %s112, %s115
      %p121 = scmp.eq.s32.totalorder %s29, 0
      %p122 = por %p120, %p121
      %p123 = scmp.ne.s32.totalorder %s112, %s115
      %p124 = scmp.eq.s32.totalorder %s34, 1
      %p125 = por %p123, %p124
      %p126 = scmp.ne.s32.totalorder %s115, %s116
      %p127 = scmp.eq.s32.totalorder %s34, 0
      %p128 = por %p126, %p127
      %p129 = scmp.ne.s32.totalorder %s115, %s116
      %p130 = scmp.eq.s32.totalorder %s35, 1
      %p131 = por %p129, %p130
      %p133 = scmp.ne.s32.totalorder %s116, %s132
      %p134 = scmp.eq.s32.totalorder %s35, 0
      %p135 = por %p133, %p134
      %s136 = ssub.s32 %s29, %s36
      %p137 = scmp.eq.s32.totalorder %s136, 0
      %s139 = sadd.s32 %s138, 1
      %s140 = scalar_select %p137, %s138, %s139
      %p143 = pneg %p137
      %p144 = scmp.eq.s32.totalorder %s29, 1
      %p145 = por %p143, %p144
      %p146 = scmp.ne.s32.totalorder %s138, %s141
      %p147 = scmp.eq.s32.totalorder %s29, 0
      %p148 = por %p146, %p147
      %p149 = scmp.ne.s32.totalorder %s138, %s141
      %p150 = scmp.eq.s32.totalorder %s34, 1
      %p151 = por %p149, %p150
      %p152 = scmp.ne.s32.totalorder %s141, %s142
      %p153 = scmp.eq.s32.totalorder %s34, 0
      %p154 = por %p152, %p153
      %p155 = scmp.ne.s32.totalorder %s141, %s142
      %p156 = scmp.eq.s32.totalorder %s35, 1
      %p157 = por %p155, %p156
      %p159 = scmp.ne.s32.totalorder %s142, %s158
      %p160 = scmp.eq.s32.totalorder %s35, 0
      %p161 = por %p159, %p160
      %s162 = ssub.s32 %s29, %s36
      %p163 = scmp.eq.s32.totalorder %s162, 0
      %s165 = sadd.s32 %s164, 1
      %s166 = scalar_select %p163, %s164, %s165
      %p169 = pneg %p163
      %p170 = scmp.eq.s32.totalorder %s29, 1
      %p171 = por %p169, %p170
      %p172 = scmp.ne.s32.totalorder %s164, %s167
      %p173 = scmp.eq.s32.totalorder %s29, 0
      %p174 = por %p172, %p173
      %p175 = scmp.ne.s32.totalorder %s164, %s167
      %p176 = scmp.eq.s32.totalorder %s34, 1
      %p177 = por %p175, %p176
      %p178 = scmp.ne.s32.totalorder %s167, %s168
      %p179 = scmp.eq.s32.totalorder %s34, 0
      %p180 = por %p178, %p179
      %p181 = scmp.ne.s32.totalorder %s167, %s168
      %p182 = scmp.eq.s32.totalorder %s35, 1
      %p183 = por %p181, %p182
      %p185 = scmp.ne.s32.totalorder %s168, %s184
      %p186 = scmp.eq.s32.totalorder %s35, 0
      %p187 = por %p185, %p186
      %s188 = ssub.s32 %s29, %s36
      %p189 = scmp.eq.s32.totalorder %s188, 0
      %s191 = sadd.s32 %s190, 1
      %s192 = scalar_select %p189, %s190, %s191
      %p195 = pneg %p189
      %p196 = scmp.eq.s32.totalorder %s29, 1
      %p197 = por %p195, %p196
      %p198 = scmp.ne.s32.totalorder %s190, %s193
      %p199 = scmp.eq.s32.totalorder %s29, 0
      %p200 = por %p198, %p199
      %p201 = scmp.ne.s32.totalorder %s190, %s193
      %p202 = scmp.eq.s32.totalorder %s34, 1
      %p203 = por %p201, %p202
      %p204 = scmp.ne.s32.totalorder %s193, %s194
      %p205 = scmp.eq.s32.totalorder %s34, 0
      %p206 = por %p204, %p205
      %p207 = scmp.ne.s32.totalorder %s193, %s194
      %p208 = scmp.eq.s32.totalorder %s35, 1
      %p209 = por %p207, %p208
      %p211 = scmp.ne.s32.totalorder %s194, %s210
      %p212 = scmp.eq.s32.totalorder %s35, 0
      %p213 = por %p211, %p212
      %s214 = ssub.s32 %s29, %s36
      %p215 = scmp.eq.s32.totalorder %s214, 0
      %s217 = sadd.s32 %s216, 1
      %s218 = scalar_select %p215, %s216, %s217
      %p221 = pneg %p215
      %p222 = scmp.eq.s32.totalorder %s29, 1
      %p223 = por %p221, %p222
      %p224 = scmp.ne.s32.totalorder %s216, %s219
      %p225 = scmp.eq.s32.totalorder %s29, 0
      %p226 = por %p224, %p225
      %p227 = scmp.ne.s32.totalorder %s216, %s219
      %p228 = scmp.eq.s32.totalorder %s34, 1
      %p229 = por %p227, %p228
      %p230 = scmp.ne.s32.totalorder %s219, %s220
      %p231 = scmp.eq.s32.totalorder %s34, 0
      %p232 = por %p230, %p231
      %p233 = scmp.ne.s32.totalorder %s219, %s220
      %p234 = scmp.eq.s32.totalorder %s35, 1
      %p235 = por %p233, %p234
      %p237 = scmp.ne.s32.totalorder %s220, %s236
      %p238 = scmp.eq.s32.totalorder %s35, 0
      %p239 = por %p237, %p238
      %s240 = ssub.s32 %s29, %s36
      %p241 = scmp.eq.s32.totalorder %s240, 0
      %s243 = sadd.s32 %s242, 1
      %s244 = scalar_select %p241, %s242, %s243
      %p247 = pneg %p241
      %p248 = scmp.eq.s32.totalorder %s29, 1
      %p249 = por %p247, %p248
      %p250 = scmp.ne.s32.totalorder %s242, %s245
      %p251 = scmp.eq.s32.totalorder %s29, 0
      %p252 = por %p250, %p251
      %p253 = scmp.ne.s32.totalorder %s242, %s245
      %p254 = scmp.eq.s32.totalorder %s34, 1
      %p255 = por %p253, %p254
      %p256 = scmp.ne.s32.totalorder %s245, %s246
      %p257 = scmp.eq.s32.totalorder %s34, 0
      %p258 = por %p256, %p257
      %p259 = scmp.ne.s32.totalorder %s245, %s246
      %p260 = scmp.eq.s32.totalorder %s35, 1
      %p261 = por %p259, %p260
      %p263 = scmp.ne.s32.totalorder %s246, %s262
      %p264 = scmp.eq.s32.totalorder %s35, 0
      %p265 = por %p263, %p264
      %s266 = ssub.s32 %s29, %s36
      %p267 = scmp.eq.s32.totalorder %s266, 0
      %s269 = sadd.s32 %s268, 1
      %s270 = scalar_select %p267, %s268, %s269
      %p273 = pneg %p267
      %p274 = scmp.eq.s32.totalorder %s29, 1
      %p275 = por %p273, %p274
      %p276 = scmp.ne.s32.totalorder %s268, %s271
      %p277 = scmp.eq.s32.totalorder %s29, 0
      %p278 = por %p276, %p277
      %p279 = scmp.ne.s32.totalorder %s268, %s271
      %p280 = scmp.eq.s32.totalorder %s34, 1
      %p281 = por %p279, %p280
      %p282 = scmp.ne.s32.totalorder %s271, %s272
      %p283 = scmp.eq.s32.totalorder %s34, 0
      %p284 = por %p282, %p283
      %p285 = scmp.ne.s32.totalorder %s271, %s272
      %p286 = scmp.eq.s32.totalorder %s35, 1
      %p287 = por %p285, %p286
      %p289 = scmp.ne.s32.totalorder %s272, %s288
      %p290 = scmp.eq.s32.totalorder %s35, 0
      %p291 = por %p289, %p290
      %p292 = scmp.le.s32.totalorder 1, %s29
      %p293 = scmp.lt.s32.totalorder %s29, 3
      %p294 = pnand %p292, %p293
      %p295 = pneg %p294
      // Predicated region
      $region9: #{tpu_custom_call.1} parent=5 // pred_check
        _
      $region10: #{tpu_custom_call.1} parent=5 // pred_check_branch
        %297 = sbr.rel (%p294) target = $region12
      $region11: #{tpu_custom_call.1} parent=5 // pred_region
        %s298 = ssub.s32 %s29, 1
        // Predicated region
        $region13: #{tpu_custom_call.1} parent=11 // pred_check
          %p299 = pneg %p102
        $region14: #{tpu_custom_call.1} parent=11 // pred_check_branch
          %301 = sbr.rel (%p299) target = $region16
        $region15: #{tpu_custom_call.1} parent=11 // pred_region
          %s303 = ssub.s32 32, 32
          %304 = vsyncadd [#allocation6], %s303
          %s306 = sshll.u32 [#allocation5], 4
          %s307 = int_to_ptr.vmem [resolvable:$true] %s306
          %309 = dma.hbm_to_vmem [thread:$0]  %s2, 32, %s307, [#allocation6]
        $region16: #{tpu_custom_call.1} parent=11 // pred_fallthru
          _
      $region12: #{tpu_custom_call.1} parent=5 // pred_fallthru
        _
      %p310 = scmp.lt.s32.totalorder %s29, 2
      // Predicated region
      $region17: #{tpu_custom_call.1} parent=5 // pred_check
        %p311 = pneg %p310
      $region18: #{tpu_custom_call.1} parent=5 // pred_check_branch
        %313 = sbr.rel (%p311) target = $region20
      $region19: #{tpu_custom_call.1} parent=5 // pred_region
        // Predicated region
        $region21: #{tpu_custom_call.1} parent=19 // pred_check
          %p314 = pneg %p49
        $region22: #{tpu_custom_call.1} parent=19 // pred_check_branch
          %316 = sbr.rel (%p314) target = $region24
        $region23: #{tpu_custom_call.1} parent=19 // pred_region
          %s317 = sand.u32 %s39, 1
          %s318 = scalar_lea.sflag [#allocation3], %s317
          %s319 = sand.u32 %s39, 1
          %s320 = smul.addr %s319, 16
          %s321 = scalar_lea.vmem [#allocation2], %s320
          %s323 = ssub.s32 256, 256
          %324 = vsyncadd %s318, %s323
          %s325 = smul.addr %s29, 2
          %s326 = smul.addr %s325, 128
          %s327 = scalar_lea.hbm %s0, %s326
          %s328 = sshll.u32 %s321, 4
          %s329 = int_to_ptr.vmem [resolvable:$true] %s328
          %334 = dma.hbm_to_vmem [thread:$0]  %s327, 256, %s329, %s318, 128, 128, 8
        $region24: #{tpu_custom_call.1} parent=19 // pred_fallthru
          _
        // Predicated region
        $region25: #{tpu_custom_call.1} parent=19 // pred_check
          %p335 = pneg %p75
        $region26: #{tpu_custom_call.1} parent=19 // pred_check_branch
          %337 = sbr.rel (%p335) target = $region28
        $region27: #{tpu_custom_call.1} parent=19 // pred_region
          %p338 = scmp.lt.s32.totalorder %s29, 1
          %s339 = scalar_select %p338, %s29, 1
          %s340 = smul.addr %s339, 8
          %s341 = scalar_lea.vmem %s1, %s340
        $region28: #{tpu_custom_call.1} parent=19 // pred_fallthru
          _
        // Predicated region
        $region29: #{tpu_custom_call.1} parent=19 // pred_check
          %p342 = pneg %p122
        $region30: #{tpu_custom_call.1} parent=19 // pred_check_branch
          %344 = sbr.rel (%p342) target = $region32
        $region31: #{tpu_custom_call.1} parent=19 // pred_region
          %p345 = scmp.lt.s32.totalorder %s29, 1
          %s346 = scalar_select %p345, %s29, 1
          %s347 = smul.addr %s346, 8
          %s348 = scalar_lea.vmem %s3, %s347
        $region32: #{tpu_custom_call.1} parent=19 // pred_fallthru
          _
        // Predicated region
        $region33: #{tpu_custom_call.1} parent=19 // pred_check
          %p349 = pneg %p148
        $region34: #{tpu_custom_call.1} parent=19 // pred_check_branch
          %351 = sbr.rel (%p349) target = $region36
        $region35: #{tpu_custom_call.1} parent=19 // pred_region
          %p352 = scmp.lt.s32.totalorder %s29, 1
          %s353 = scalar_select %p352, %s29, 1
          %s354 = smul.addr %s353, 8
          %s355 = scalar_lea.vmem %s4, %s354
        $region36: #{tpu_custom_call.1} parent=19 // pred_fallthru
          _
      $region20: #{tpu_custom_call.1} parent=5 // pred_fallthru
        _
      %p356 = scmp.le.s32.totalorder 1, %s29
      %p357 = scmp.lt.s32.totalorder %s29, 3
      %p358 = pnand %p356, %p357
      %p359 = pneg %p358
      // Predicated region
      $region37: #{tpu_custom_call.1} parent=5 // pred_check
        _
      $region38: #{tpu_custom_call.1} parent=5 // pred_check_branch
        %361 = sbr.rel (%p358) target = $region40
      $region39: #{tpu_custom_call.1} parent=5 // pred_region
        %s362 = ssub.s32 %s29, 1
        %s363 = sand.u32 %s42, 1
        %s364 = scalar_lea.sflag [#allocation3], %s363
        %s365 = sand.u32 %s42, 1
        %s366 = smul.addr %s365, 16
        %s367 = scalar_lea.vmem [#allocation2], %s366
        // Predicated region
        $region41: #{tpu_custom_call.1} parent=39 // pred_check
          %p368 = pneg %p55
        $region42: #{tpu_custom_call.1} parent=39 // pred_check_branch
          %370 = sbr.rel (%p368) target = $region44
        $region43: #{tpu_custom_call.1} parent=39 // pred_region
          %371 = dma.done %s364, 256
        $region44: #{tpu_custom_call.1} parent=39 // pred_fallthru
          _
        // Predicated region
        $region45: #{tpu_custom_call.1} parent=39 // pred_check
          %p372 = pneg %p102
        $region46: #{tpu_custom_call.1} parent=39 // pred_check_branch
          %374 = sbr.rel (%p372) target = $region48
        $region47: #{tpu_custom_call.1} parent=39 // pred_region
          %375 = dma.done [#allocation6], 32
        $region48: #{tpu_custom_call.1} parent=39 // pred_fallthru
          _
        %s376 = sand.u32 %s42, 1
        %s377 = scalar_lea.sflag [#allocation3], %s376
        %s378 = sand.u32 %s42, 1
        %s379 = smul.addr %s378, 16
        %s380 = scalar_lea.vmem [#allocation2], %s379
        %p381 = pneg %p55
        %p382 = pneg %p52
        %p383 = scmp.lt.s32.totalorder %s34, 1
        %s384 = scalar_select %p383, %s34, 1
        %s385 = smul.addr %s384, 8
        %s386 = scalar_lea.vmem %s1, %s385
        %p387 = pneg %p81
        %p388 = pneg %p78
        %p389 = pneg %p102
        %p390 = pneg %p99
        %p391 = scmp.lt.s32.totalorder %s34, 1
        %s392 = scalar_select %p391, %s34, 1
        %s393 = smul.addr %s392, 8
        %s394 = scalar_lea.vmem %s3, %s393
        %p395 = pneg %p128
        %p396 = pneg %p125
        %p397 = scmp.lt.s32.totalorder %s34, 1
        %s398 = scalar_select %p397, %s34, 1
        %s399 = smul.addr %s398, 8
        %s400 = scalar_lea.vmem %s4, %s399
        %p401 = pneg %p154
        %p402 = pneg %p151
        %p403 = pneg %p180
        %p404 = pneg %p177
        %s405 = sand.u32 %s167, 1
        %s406 = scalar_lea.sflag [#allocation4], %s405
        %s407 = sand.u32 %s167, 1
        %s408 = scalar_lea.vmem [#allocation7], %s407
        %p409 = pneg %p206
        %p410 = pneg %p203
        %s411 = sand.u32 %s34, 1
        %s412 = scalar_lea.sflag [#allocation9], %s411
        %s413 = sand.u32 %s193, 1
        %s414 = smul.addr %s413, 4
        %s415 = scalar_lea.vmem [#allocation8], %s414
        %p416 = pneg %p232
        %p417 = pneg %p229
        %s418 = sand.u32 %s34, 1
        %s419 = scalar_lea.sflag [#allocation9], %s418
        %s420 = sand.u32 %s219, 1
        %s421 = smul.addr %s420, 16
        %s422 = scalar_lea.vmem [#allocation10], %s421
        %p423 = pneg %p258
        %p424 = pneg %p255
        %s425 = sand.u32 %s34, 1
        %s426 = scalar_lea.sflag [#allocation12], %s425
        %s427 = sand.u32 %s245, 1
        %s428 = scalar_lea.vmem [#allocation11], %s427
        %p429 = pneg %p284
        %p430 = pneg %p281
        %s431 = sand.u32 %s34, 1
        %s432 = scalar_lea.sflag [#allocation12], %s431
        %s433 = sand.u32 %s271, 1
        %s434 = scalar_lea.vmem [#allocation13], %s433
        %p435 = scmp.lt.s32.totalorder %s34, 1
        %s436 = scalar_select %p435, %s34, 1
        %s437 = smul.addr %s436, 8
        %s438 = scalar_lea.vmem %s1, %s437
        %p439 = scmp.lt.s32.totalorder %s34, 1
        %s440 = scalar_select %p439, %s34, 1
        %s441 = smul.addr %s440, 8
        %s442 = scalar_lea.vmem %s3, %s441
        %p443 = scmp.lt.s32.totalorder %s34, 1
        %s444 = scalar_select %p443, %s34, 1
        %s445 = smul.addr %s444, 8
        %s446 = scalar_lea.vmem %s4, %s445
        %v447 = vld [vmem:[%s367] sm:$0xff]
        %v448 = vld [vmem:[%s367 + $0x8] sm:$0xff]
        %v449 = vld [vmem:[%s438] sm:$0x1f]
        %v450 = vld [vmem:[#allocation5] sm:$0x3]
        %v451 = vld [vmem:[%s442] sm:$0xff]
        %v452 = vld [vmem:[%s446] sm:$0xff]
        %v453 = vcvt.f32.s32.to.zero.pseudo %v451
        %v454 = vlaneseq
        %v455 = vand.u32 %v454, 127
        %456 = vset.pattern.permute.xlu0 0
        %457 = vperm.xlu0 %456, %v453
        %v458 = vpop.permute.xlu0 %457
        %vm459 = vcmp.eq.s32.totalorder %v455, %v458
        %v460 = vsel %vm459, 1, 0
        %v461 = vcvt.s32.f32 %v460
        %vm462 = vcmask 130048
        %v464 = vsel %vm462, %v461, 0
        %466 = vmatprep.subr.mxu0 0.0
        %467 = vmatpush1.msra.mxu0 0.0
        %468 = vmatprep.subr.mxu0 0.0
        %469 = vmatpush1.msra.mxu0 0.0
        %470 = vmatprep.subr.mxu0 0.0
        %471 = vmatpush1.msra.mxu0 0.0
        %472 = vmatprep.subr.mxu0 0.0
        %473 = vmatpush1.msra.mxu0 0.0
        %474 = vmatprep.subr.mxu0 0.0
        %475 = vmatpush1.msra.mxu0 0.0
        %476 = vmatprep.subr.mxu0 0.0
        %477 = vmatpush1.msra.mxu0 0.0
        %478 = vmatprep.subr.mxu0 0.0
        %479 = vmatpush1.msra.mxu0 0.0
        %480 = vmatprep.subr.mxu0 0.0
        %481 = vmatpush1.msra.mxu0 0.0
        %482 = vmatprep.subr.mxu0 0.0
        %483 = vmatpush1.msra.mxu0 0.0
        %484 = vmatprep.subr.mxu0 0.0
        %485 = vmatpush1.msra.mxu0 0.0
        %486 = vmatprep.subr.mxu0 0.0
        %487 = vmatpush1.msra.mxu0 0.0
        %488 = vmatprep.subr.mxu0 0.0
        %489 = vmatpush1.msra.mxu0 0.0
        %490 = vmatprep.subr.mxu0 0.0
        %491 = vmatpush1.msra.mxu0 0.0
        %492 = vmatprep.subr.mxu0 0.0
        %493 = vmatpush1.msra.mxu0 0.0
        %494 = vmatprep.subr.mxu0 0.0
        %495 = vmatpush1.msra.mxu0 %v448
        %496 = vmatprep.subr.mxu0 0.0
        %497 = vmatpush1.msra.mxu0 %v447
        %498 = vmatprep.subr.mxu0 0.0
        %499 = vmatpush2.msra.mxu0 0.0
        %500 = vmatprep.subr.mxu0 0.0
        %501 = vmatpush2.msra.mxu0 0.0
        %502 = vmatprep.subr.mxu0 0.0
        %503 = vmatpush2.msra.mxu0 0.0
        %504 = vmatprep.subr.mxu0 0.0
        %505 = vmatpush2.msra.mxu0 0.0
        %506 = vmatprep.subr.mxu0 0.0
        %507 = vmatpush2.msra.mxu0 0.0
        %508 = vmatprep.subr.mxu0 0.0
        %509 = vmatpush2.msra.mxu0 0.0
        %510 = vmatprep.subr.mxu0 0.0
        %511 = vmatpush2.msra.mxu0 0.0
        %512 = vmatprep.subr.mxu0 0.0
        %513 = vmatpush2.msra.mxu0 0.0
        %514 = vmatprep.subr.mxu0 0.0
        %515 = vmatpush2.msra.mxu0 0.0
        %516 = vmatprep.subr.mxu0 0.0
        %517 = vmatpush2.msra.mxu0 0.0
        %518 = vmatprep.subr.mxu0 0.0
        %519 = vmatpush2.msra.mxu0 0.0
        %520 = vmatprep.subr.mxu0 0.0
        %521 = vmatpush2.msra.mxu0 0.0
        %522 = vmatprep.subr.mxu0 0.0
        %523 = vmatpush2.msra.mxu0 0.0
        %524 = vmatprep.subr.mxu0 0.0
        %525 = vmatpush2.msra.mxu0 0.0
        %526 = vmatprep.subr.mxu0 0.0
        %527 = vmatpush2.msra.mxu0 0.0
        %528 = vmatprep.subr.mxu0 0.0
        %529 = vmatpush2.msra.mxu0 0.0
        %530 = vmatprep.mubr.f32.mxu0 0.0
        %531 = vmatmul.mubr.f32.gmra.mxu0 %v464
        %v532 = vpop.f32.mrf.mxu0
        %v533 = vadd.f32 0.0, %v532
        %v534 = vpop.f32.mrf.mxu0
        %535 = vdwg.mxu0
        %537 = vrot.lane.b32.xlu0 %v451, 2
        %v538 = vpop.permute.xlu0 %537
        %v540 = vsub.f32 %v451, %v538
        %v541 = vadd.f32 %v540, 1e-07
        %v543 = vrot.slane %v449, 6
        %v545 = vsub.f32 %v449, %v543
        %v546 = vadd.f32 %v545, 1e-07
        %547 = vset.pattern.permute.xlu0 3
        %548 = vperm.xlu0 %547, %v451
        %v549 = vpop.permute.xlu0 %548
        %v551 = vlaneseq
        %v552 = vshrl.u32 %v551, 7
        %v553 = vsub.s32 2, %v552
        %v554 = vrot.slane %v449, %v553
        %v555 = vmin.f32 %v549, %v554
        %556 = vset.pattern.permute.xlu0 1
        %557 = vperm.xlu0 %556, %v451
        %v558 = vpop.permute.xlu0 %557
        %v560 = vlaneseq
        %v561 = vshrl.u32 %v560, 7
        %v562 = vsub.s32 0, %v561
        %v563 = vrot.slane %v449, %v562
        %v564 = vmax.f32 %v558, %v563
        %v565 = vsub.f32 %v555, %v564
        %v566 = vmax.f32 %v565, 0.0
        %567 = vset.pattern.permute.xlu0 4
        %568 = vperm.xlu0 %567, %v451
        %v569 = vpop.permute.xlu0 %568
        %v571 = vlaneseq
        %v572 = vshrl.u32 %v571, 7
        %v573 = vsub.s32 3, %v572
        %v574 = vrot.slane %v449, %v573
        %v575 = vmin.f32 %v569, %v574
        %576 = vset.pattern.permute.xlu0 2
        %577 = vperm.xlu0 %576, %v451
        %v578 = vpop.permute.xlu0 %577
        %v580 = vlaneseq
        %v581 = vshrl.u32 %v580, 7
        %v582 = vsub.s32 1, %v581
        %v583 = vrot.slane %v449, %v582
        %v584 = vmax.f32 %v578, %v583
        %v585 = vsub.f32 %v575, %v584
        %v586 = vmax.f32 %v585, 0.0
        %v587 = vmul.f32 %v566, %v586
        %589 = vrot.lane.b32.xlu0 %v541, 127
        %v590 = vpop.permute.xlu0 %589
        %v592 = vmul.f32 %v540, %v590
        %v594 = vrot.slane %v546, 1
        %v596 = vmul.f32 %v545, %v594
        %598 = vset.pattern.permute.xlu0 3
        %599 = vperm.xlu0 %598, %v592
        %v600 = vpop.permute.xlu0 %599
        %v602 = vlaneseq
        %v603 = vshrl.u32 %v602, 7
        %v604 = vsub.s32 2, %v603
        %v605 = vrot.slane %v596, %v604
        %v606 = vadd.f32 %v600, %v605
        %v607 = vsub.f32 %v606, %v587
        %v608 = vadd.f32 %v607, 1e-07
        %v609 = vrcp.pop %v608
        %v610 = vmul.f32 %v587, %v609
        %v611 = vmax.f32 %v549, %v554
        %v612 = vmin.f32 %v558, %v563
        %v613 = vsub.f32 %v611, %v612
        %v614 = vmax.f32 %v569, %v574
        %v615 = vmin.f32 %v578, %v583
        %v616 = vsub.f32 %v614, %v615
        %v617 = vmul.f32 %v613, %v613
        %v618 = vmul.f32 %v616, %v616
        %v619 = vadd.f32 %v617, %v618
        %v620 = vadd.f32 %v619, 1e-07
        %v621 = vrot.slane %v449, 2
        %v623 = vadd.f32 %v449, %v621
        %624 = vrot.lane.b32.xlu0 %v451, 126
        %v625 = vpop.permute.xlu0 %624
        %v627 = vadd.f32 %v451, %v625
        %v628 = vlaneseq
        %v629 = vshrl.u32 %v628, 7
        %v630 = vsub.s32 0, %v629
        %v631 = vrot.slane %v623, %v630
        %633 = vset.pattern.permute.xlu0 1
        %634 = vperm.xlu0 %633, %v627
        %v635 = vpop.permute.xlu0 %634
        %v637 = vsub.f32 %v631, %v635
        %v638 = vlaneseq
        %v639 = vshrl.u32 %v638, 7
        %v640 = vsub.s32 1, %v639
        %v641 = vrot.slane %v623, %v640
        %642 = vset.pattern.permute.xlu0 2
        %643 = vperm.xlu0 %642, %v627
        %v644 = vpop.permute.xlu0 %643
        %v646 = vsub.f32 %v641, %v644
        %v647 = vmul.f32 %v637, %v637
        %v648 = vmul.f32 %v646, %v646
        %v649 = vadd.f32 %v647, %v648
        %v650 = vmul.f32 %v649, 0.25
        %v651 = vlaneseq
        %v652 = vshrl.u32 %v651, 7
        %v653 = vsub.s32 4, %v652
        %v654 = vrot.slane %v449, %v653
        %655 = vset.pattern.permute.xlu0 6
        %656 = vperm.xlu0 %655, %v451
        %v657 = vpop.permute.xlu0 %656
        %v659 = vsub.f32 %v654, %v657
        %v660 = vmul.f32 %v659, %v659
        %v661 = vmul.f32 %v660, 0.40528473
        %v662 = vsub.f32 %v661, %v610
        %v663 = vadd.f32 %v662, 1.0000001
        %v664 = vrcp.pop %v663
        %v665 = vmul.f32 %v661, %v664
        %v666 = vrcp.pop %v620
        %v667 = vmul.f32 %v650, %v666
        %v668 = vmul.f32 %v661, %v665
        %v669 = vadd.f32 %v667, %v668
        %v670 = vsub.f32 %v610, %v669
        %v671 = vmax.f32 %v670, 0.0
        %v672 = vmul.f32 %v671, %v671
        %v673 = vmul.f32 %v672, %v672
        %v674 = vmul.f32 %v673, %v672
        %v675 = vmul.f32 %v533, %v674
        %v676 = vlaneseq
        %v677 = vshrl.u32 %v676, 7
        %v678 = vsub.s32 0, %v677
        %v679 = vrot.slane %v450, %v678
        %v680 = vsub.f32 %v679, %v558
        %v681 = vlaneseq
        %v682 = vshrl.u32 %v681, 7
        %v683 = vsub.s32 1, %v682
        %v684 = vrot.slane %v450, %v683
        %v685 = vsub.f32 %v684, %v578
        %v686 = vmin.f32 %v680, %v685
        %v687 = vsub.f32 %v549, %v679
        %v688 = vsub.f32 %v569, %v684
        %v689 = vmin.f32 %v687, %v688
        %v690 = vmin.f32 %v686, %v689
        %vm691 = vcmp.gt.f32.partialorder %v690, 1e-09
        %v692 = vsel %vm691, %v675, 0.0
        loop: start=0, step=1, limit=13
        $region49: #{tpu_custom_call.1} parent=39 // loop_pre_header
          _
        $region50: #{tpu_custom_call.1} parent=39 // loop_header
          %s694 = sphi 0, %s698
          %p695 = scmp.ge.s32.totalorder %s694, 13
          %v699 = vphi %v692, %v721
          %v700 = vphi 0.0, %v720
        $region51: #{tpu_custom_call.1} parent=39 // loop_header_branch
          %697 = sbr.rel (%p695) target = $region55
        $region52: #{tpu_custom_call.1} parent=39 // loop_body
          %701 = vmax.xlane.f32.xlu0 %v699
          %v702 = vpop.xlane.xlu0 %701
          %vm703 = vcmp.eq.f32.partialorder %v699, %v702
          %v704 = vsel %vm703, %v455, 128
          %v705 = vand.u32 %v704, 65535
          %v706 = vshra.s32 %v704, 16
          %v707 = vcvt.s32.f32 %v705
          %v708 = vcvt.s32.f32 %v706
          %709 = vmin.xlane.f32.xlu0 %v708
          %v710 = vpop.xlane.xlu0 %709
          %vm711 = vcmp.eq.f32.partialorder %v708, %v710
          %v712 = vsel %vm711, %v707, inf
          %713 = vmin.xlane.f32.xlu0 %v712
          %v714 = vpop.xlane.xlu0 %713
          %v715 = vcvt.f32.s32 %v714
          %v716 = vcvt.f32.s32 %v710
          %v717 = vshll.u32 %v716, 16
          %v718 = vadd.s32 %v717, %v715
          %vm719 = vcmp.eq.s32.totalorder %v704, %v718
          %v720 = vsel %vm719, 1.0, %v700
          %v721 = vsel %vm719, -1.0, %v699
        $region53: #{tpu_custom_call.1} parent=39 // loop_footer
          %s698 = sadd.s32 1, %s694
        $region54: #{tpu_custom_call.1} parent=39 // loop_footer_branch
          %693 = sbr.rel target = $region50
        $region55: #{tpu_custom_call.1} parent=39 // loop_exit
          _
        %722 = vset.pattern.permute.xlu0 5
        %723 = vperm.xlu0 %722, %v451
        %v724 = vpop.permute.xlu0 %723
        %v726 = vmul.f32 %v700, %v724
        %v727 = vsel %vm691, %v726, 0.0
        %v728 = vlaneseq
        %v729 = vshrl.u32 %v728, 7
        %v730 = vrot.slane %v727, 4
        %v731 = vadd.f32 %v727, %v730
        %v732 = vrot.slane %v731, 2
        %v733 = vadd.f32 %v731, %v732
        %v734 = vrot.slane %v733, 1
        %v735 = vadd.f32 %v733, %v734
        %v736 = vrot.slane %v671, 4
        %v737 = vmax.f32 %v671, %v736
        %v738 = vrot.slane %v737, 2
        %v739 = vmax.f32 %v737, %v738
        %v740 = vrot.slane %v739, 1
        %v741 = vmax.f32 %v739, %v740
        %vm742 = vcmp.eq.f32.partialorder %v671, %v741
        %v743 = vsel %vm742, %v729, 8
        %v744 = vrot.slane %v743, 4
        %vm745 = vcmp.lt.s32.totalorder %v743, %v744
        %v746 = vsel %vm745, %v743, %v744
        %v747 = vrot.slane %v746, 2
        %vm748 = vcmp.lt.s32.totalorder %v746, %v747
        %v749 = vsel %vm748, %v746, %v747
        %v750 = vrot.slane %v749, 1
        %vm751 = vcmp.lt.s32.totalorder %v749, %v750
        %v752 = vsel %vm751, %v749, %v750
        %vm753 = vcmp.eq.s32.totalorder %v729, %v752
        %v754 = vsel %vm753, 1, 0
        %v755 = vcvt.s32.f32 %v754
        %vm756 = vcmp.gt.f32.partialorder %v735, 1.0
        %v757 = vsel %vm756, 1, 0
        %vm758 = vcmp.eq.s32.totalorder %v757, 1
        %v759 = vsel %vm758, %v755, %v727
        %v760 = vrot.slane %v759, 4
        %v761 = vadd.f32 %v759, %v760
        %v762 = vrot.slane %v761, 2
        %v763 = vadd.f32 %v761, %v762
        %v764 = vrot.slane %v763, 1
        %v765 = vadd.f32 %v763, %v764
        %v766 = vrot.slane %v759, 4
        %v767 = vmax.f32 %v759, %v766
        %v768 = vrot.slane %v767, 2
        %v769 = vmax.f32 %v767, %v768
        %v770 = vrot.slane %v769, 1
        %v771 = vmax.f32 %v769, %v770
        %vm772 = vcmp.eq.f32.partialorder %v759, %v771
        %v773 = vsel %vm772, %v729, 8
        %v774 = vrot.slane %v773, 4
        %vm775 = vcmp.lt.s32.totalorder %v773, %v774
        %v776 = vsel %vm775, %v773, %v774
        %v777 = vrot.slane %v776, 2
        %vm778 = vcmp.lt.s32.totalorder %v776, %v777
        %v779 = vsel %vm778, %v776, %v777
        %v780 = vrot.slane %v779, 1
        %vm781 = vcmp.lt.s32.totalorder %v779, %v780
        %v782 = vsel %vm781, %v779, %v780
        %vm783 = vcmp.eq.s32.totalorder %v729, %v782
        %v784 = vsel %vm783, 1, 0
        %v785 = vcvt.s32.f32 %v784
        %vm786 = vcmask 64512
        %v788 = vsel %vm786, %v452, 0
        %790 = vmatprep.subr.mxu0 0.0
        %791 = vmatpush1.msra.mxu0 0.0
        %792 = vmatprep.subr.mxu0 0.0
        %793 = vmatpush1.msra.mxu0 0.0
        %794 = vmatprep.subr.mxu0 0.0
        %795 = vmatpush1.msra.mxu0 0.0
        %796 = vmatprep.subr.mxu0 0.0
        %797 = vmatpush1.msra.mxu0 0.0
        %798 = vmatprep.subr.mxu0 0.0
        %799 = vmatpush1.msra.mxu0 0.0
        %800 = vmatprep.subr.mxu0 0.0
        %801 = vmatpush1.msra.mxu0 0.0
        %802 = vmatprep.subr.mxu0 0.0
        %803 = vmatpush1.msra.mxu0 0.0
        %804 = vmatprep.subr.mxu0 0.0
        %805 = vmatpush1.msra.mxu0 0.0
        %806 = vmatprep.subr.mxu0 0.0
        %807 = vmatpush1.msra.mxu0 0.0
        %808 = vmatprep.subr.mxu0 0.0
        %809 = vmatpush1.msra.mxu0 0.0
        %810 = vmatprep.subr.mxu0 0.0
        %811 = vmatpush1.msra.mxu0 0.0
        %812 = vmatprep.subr.mxu0 0.0
        %813 = vmatpush1.msra.mxu0 0.0
        %814 = vmatprep.subr.mxu0 0.0
        %815 = vmatpush1.msra.mxu0 0.0
        %816 = vmatprep.subr.mxu0 0.0
        %817 = vmatpush1.msra.mxu0 0.0
        %818 = vmatprep.subr.mxu0 0.0
        %819 = vmatpush1.msra.mxu0 0.0
        %820 = vmatprep.subr.mxu0 0.0
        %821 = vmatpush1.msra.mxu0 %v785
        %822 = vmatprep.subr.mxu0 0.0
        %823 = vmatpush2.msra.mxu0 0.0
        %824 = vmatprep.subr.mxu0 0.0
        %825 = vmatpush2.msra.mxu0 0.0
        %826 = vmatprep.subr.mxu0 0.0
        %827 = vmatpush2.msra.mxu0 0.0
        %828 = vmatprep.subr.mxu0 0.0
        %829 = vmatpush2.msra.mxu0 0.0
        %830 = vmatprep.subr.mxu0 0.0
        %831 = vmatpush2.msra.mxu0 0.0
        %832 = vmatprep.subr.mxu0 0.0
        %833 = vmatpush2.msra.mxu0 0.0
        %834 = vmatprep.subr.mxu0 0.0
        %835 = vmatpush2.msra.mxu0 0.0
        %836 = vmatprep.subr.mxu0 0.0
        %837 = vmatpush2.msra.mxu0 0.0
        %838 = vmatprep.subr.mxu0 0.0
        %839 = vmatpush2.msra.mxu0 0.0
        %840 = vmatprep.subr.mxu0 0.0
        %841 = vmatpush2.msra.mxu0 0.0
        %842 = vmatprep.subr.mxu0 0.0
        %843 = vmatpush2.msra.mxu0 0.0
        %844 = vmatprep.subr.mxu0 0.0
        %845 = vmatpush2.msra.mxu0 0.0
        %846 = vmatprep.subr.mxu0 0.0
        %847 = vmatpush2.msra.mxu0 0.0
        %848 = vmatprep.subr.mxu0 0.0
        %849 = vmatpush2.msra.mxu0 0.0
        %850 = vmatprep.subr.mxu0 0.0
        %851 = vmatpush2.msra.mxu0 0.0
        %852 = vmatprep.subr.mxu0 0.0
        %853 = vmatpush2.msra.mxu0 0.0
        %854 = vmatprep.mubr.f32.mxu0 0.0
        %855 = vmatmul.mubr.f32.gmra.mxu0 %v788
        %v856 = vpop.f32.mrf.mxu0
        %v857 = vadd.f32 0.0, %v856
        %v858 = vpop.f32.mrf.mxu0
        %859 = vdwg.mxu0
        %v860 = vadd.f32 %v857, 0.5
        %v861 = vcvt.f32.s32.to.zero.pseudo %v860
        %v862 = vmul.f32 %v675, %v759
        %863 = vmax.xlane.f32.xlu0 %v862
        %v864 = vpop.xlane.xlu0 %863
        %v865 = vmul.f32 %v671, %v759
        %866 = vmax.xlane.f32.xlu0 %v865
        %v867 = vpop.xlane.xlu0 %866
        %v868 = vadd.f32 %v864, 1e-09
        %v869 = vrcp.pop %v868
        %v870 = vmul.f32 %v867, %v869
        %v871 = vmul.f32 %v862, %v870
        %v872 = vrot.slane %v871, 4
        %v873 = vmax.f32 %v871, %v872
        %v874 = vrot.slane %v873, 2
        %v875 = vmax.f32 %v873, %v874
        %v876 = vrot.slane %v875, 1
        %v877 = vmax.f32 %v875, %v876
        %v878 = vadd.s32 %v729, 8
        %vm879 = vcmp.gt.f32.partialorder %v765, 0.0
        %v880 = vsel %vm879, %v877, 0.0
        %v881 = vlaneseq
        %v882 = vshrl.u32 %v881, 7
        %v883 = vsub.s32 0, %v882
        %v884 = vrot.slane %v861, %v883
        %vm885 = vcmp.eq.s32.totalorder %v729, %v884
        %vm886 = vcmp.eq.s32.totalorder %v878, %v884
        %v887 = vsel %vm885, %v880, 0.0
        %v888 = vsel %vm886, %v880, 0.0
        %889 = vst [vmem:[%s408] sm:$0x1] %v861
        %890 = vst [vmem:[%s415 - $0x1] sm:$0x1e] %v857
        %891 = vst [vmem:[%s422] sm:$0xff] %v887
        %892 = vst [vmem:[%s422 + $0x8] sm:$0xff] %v888
        %893 = vst [vmem:[%s428] sm:$0x1] %v765
        %894 = vst [vmem:[%s434] sm:$0x1] %v782
        %s895 = sand.u32 %s167, 1
        %s896 = scalar_lea.sflag [#allocation4], %s895
        %s897 = sand.u32 %s167, 1
        %s898 = scalar_lea.vmem [#allocation7], %s897
        %s899 = sand.u32 %s34, 1
        %s900 = scalar_lea.sflag [#allocation9], %s899
        %s901 = sand.u32 %s193, 1
        %s902 = smul.addr %s901, 4
        %s903 = scalar_lea.vmem [#allocation8], %s902
        %s904 = sand.u32 %s34, 1
        %s905 = scalar_lea.sflag [#allocation9], %s904
        %s906 = sand.u32 %s219, 1
        %s907 = smul.addr %s906, 16
        %s908 = scalar_lea.vmem [#allocation10], %s907
        %s909 = sand.u32 %s34, 1
        %s910 = scalar_lea.sflag [#allocation12], %s909
        %s911 = sand.u32 %s245, 1
        %s912 = scalar_lea.vmem [#allocation11], %s911
        %s913 = sand.u32 %s34, 1
        %s914 = scalar_lea.sflag [#allocation12], %s913
        %s915 = sand.u32 %s271, 1
        %s916 = scalar_lea.vmem [#allocation13], %s915
        // Predicated region
        $region56: #{tpu_custom_call.1} parent=39 // pred_check
          %p917 = pneg %p177
        $region57: #{tpu_custom_call.1} parent=39 // pred_check_branch
          %919 = sbr.rel (%p917) target = $region59
        $region58: #{tpu_custom_call.1} parent=39 // pred_region
          %s921 = ssub.s32 16, 16
          %922 = vsyncadd %s896, %s921
          %s923 = smul.addr %s34, 16
          %s924 = scalar_lea.hbm %s5, %s923
          %s926 = sshll.u32 %s898, 4
          %s927 = int_to_ptr.vmem [resolvable:$true] %s926
          %929 = dma.vmem_to_hbm [thread:$0]  %s927, 16, %s924, %s896
        $region59: #{tpu_custom_call.1} parent=39 // pred_fallthru
          _
        // Predicated region
        $region60: #{tpu_custom_call.1} parent=39 // pred_check
          %p930 = pneg %p203
        $region61: #{tpu_custom_call.1} parent=39 // pred_check_branch
          %932 = sbr.rel (%p930) target = $region63
        $region62: #{tpu_custom_call.1} parent=39 // pred_region
          %s934 = ssub.s32 64, 64
          %935 = vsyncadd %s900, %s934
          %s936 = smul.addr %s34, 64
          %s937 = scalar_lea.hbm %s6, %s936
          %s939 = sshll.u32 %s903, 4
          %s940 = int_to_ptr.vmem [resolvable:$true] %s939
          %942 = dma.vmem_to_hbm [thread:$0]  %s940, 64, %s937, %s900
        $region63: #{tpu_custom_call.1} parent=39 // pred_fallthru
          _
        // Predicated region
        $region64: #{tpu_custom_call.1} parent=39 // pred_check
          %p943 = pneg %p229
        $region65: #{tpu_custom_call.1} parent=39 // pred_check_branch
          %945 = sbr.rel (%p943) target = $region67
        $region66: #{tpu_custom_call.1} parent=39 // pred_region
          %s947 = ssub.s32 256, 256
          %948 = vsyncadd %s905, %s947
          %s949 = smul.addr %s34, 2
          %s950 = smul.addr %s949, 128
          %s951 = scalar_lea.hbm %s7, %s950
          %s952 = sshll.u32 %s908, 4
          %s953 = int_to_ptr.vmem [resolvable:$true] %s952
          %958 = dma.vmem_to_hbm [thread:$0]  %s953, 256, %s951, %s905, 128, 128, 8
        $region67: #{tpu_custom_call.1} parent=39 // pred_fallthru
          _
        // Predicated region
        $region68: #{tpu_custom_call.1} parent=39 // pred_check
          %p959 = pneg %p255
        $region69: #{tpu_custom_call.1} parent=39 // pred_check_branch
          %961 = sbr.rel (%p959) target = $region71
        $region70: #{tpu_custom_call.1} parent=39 // pred_region
          %s963 = ssub.s32 16, 16
          %964 = vsyncadd %s910, %s963
          %s965 = smul.addr %s34, 16
          %s966 = scalar_lea.hbm %s8, %s965
          %s968 = sshll.u32 %s912, 4
          %s969 = int_to_ptr.vmem [resolvable:$true] %s968
          %971 = dma.vmem_to_hbm [thread:$0]  %s969, 16, %s966, %s910
        $region71: #{tpu_custom_call.1} parent=39 // pred_fallthru
          _
        // Predicated region
        $region72: #{tpu_custom_call.1} parent=39 // pred_check
          %p972 = pneg %p281
        $region73: #{tpu_custom_call.1} parent=39 // pred_check_branch
          %974 = sbr.rel (%p972) target = $region75
        $region74: #{tpu_custom_call.1} parent=39 // pred_region
          %s976 = ssub.s32 16, 16
          %977 = vsyncadd %s914, %s976
          %s978 = smul.addr %s34, 16
          %s979 = scalar_lea.hbm %s9, %s978
          %s981 = sshll.u32 %s916, 4
          %s982 = int_to_ptr.vmem [resolvable:$true] %s981
          %984 = dma.vmem_to_hbm [thread:$0]  %s982, 16, %s979, %s914
        $region75: #{tpu_custom_call.1} parent=39 // pred_fallthru
          _
      $region40: #{tpu_custom_call.1} parent=5 // pred_fallthru
        _
      %p985 = scmp.le.s32.totalorder 2, %s29
      // Predicated region
      $region76: #{tpu_custom_call.1} parent=5 // pred_check
        %p986 = pneg %p985
      $region77: #{tpu_custom_call.1} parent=5 // pred_check_branch
        %988 = sbr.rel (%p986) target = $region79
      $region78: #{tpu_custom_call.1} parent=5 // pred_region
        %s989 = ssub.s32 %s29, 2
        // Predicated region
        $region80: #{tpu_custom_call.1} parent=78 // pred_check
          %p990 = pneg %p183
        $region81: #{tpu_custom_call.1} parent=78 // pred_check_branch
          %992 = sbr.rel (%p990) target = $region83
        $region82: #{tpu_custom_call.1} parent=78 // pred_region
          %s993 = sand.u32 %s168, 1
          %s994 = scalar_lea.sflag [#allocation4], %s993
          %s995 = sand.u32 %s168, 1
          %s996 = scalar_lea.vmem [#allocation7], %s995
          %997 = dma.done %s994, 16
        $region83: #{tpu_custom_call.1} parent=78 // pred_fallthru
          _
        // Predicated region
        $region84: #{tpu_custom_call.1} parent=78 // pred_check
          %p998 = pneg %p209
        $region85: #{tpu_custom_call.1} parent=78 // pred_check_branch
          %1000 = sbr.rel (%p998) target = $region87
        $region86: #{tpu_custom_call.1} parent=78 // pred_region
          %s1001 = sand.u32 %s35, 1
          %s1002 = scalar_lea.sflag [#allocation9], %s1001
          %s1003 = sand.u32 %s194, 1
          %s1004 = smul.addr %s1003, 4
          %s1005 = scalar_lea.vmem [#allocation8], %s1004
          %1006 = dma.done %s1002, 64
        $region87: #{tpu_custom_call.1} parent=78 // pred_fallthru
          _
        // Predicated region
        $region88: #{tpu_custom_call.1} parent=78 // pred_check
          %p1007 = pneg %p235
        $region89: #{tpu_custom_call.1} parent=78 // pred_check_branch
          %1009 = sbr.rel (%p1007) target = $region91
        $region90: #{tpu_custom_call.1} parent=78 // pred_region
          %s1010 = sand.u32 %s35, 1
          %s1011 = scalar_lea.sflag [#allocation9], %s1010
          %s1012 = sand.u32 %s220, 1
          %s1013 = smul.addr %s1012, 16
          %s1014 = scalar_lea.vmem [#allocation10], %s1013
          %1015 = dma.done %s1011, 256
        $region91: #{tpu_custom_call.1} parent=78 // pred_fallthru
          _
        // Predicated region
        $region92: #{tpu_custom_call.1} parent=78 // pred_check
          %p1016 = pneg %p261
        $region93: #{tpu_custom_call.1} parent=78 // pred_check_branch
          %1018 = sbr.rel (%p1016) target = $region95
        $region94: #{tpu_custom_call.1} parent=78 // pred_region
          %s1019 = sand.u32 %s35, 1
          %s1020 = scalar_lea.sflag [#allocation12], %s1019
          %s1021 = sand.u32 %s246, 1
          %s1022 = scalar_lea.vmem [#allocation11], %s1021
          %1023 = dma.done %s1020, 16
        $region95: #{tpu_custom_call.1} parent=78 // pred_fallthru
          _
        // Predicated region
        $region96: #{tpu_custom_call.1} parent=78 // pred_check
          %p1024 = pneg %p287
        $region97: #{tpu_custom_call.1} parent=78 // pred_check_branch
          %1026 = sbr.rel (%p1024) target = $region99
        $region98: #{tpu_custom_call.1} parent=78 // pred_region
          %s1027 = sand.u32 %s35, 1
          %s1028 = scalar_lea.sflag [#allocation12], %s1027
          %s1029 = sand.u32 %s272, 1
          %s1030 = scalar_lea.vmem [#allocation13], %s1029
          %1031 = dma.done %s1028, 16
        $region99: #{tpu_custom_call.1} parent=78 // pred_fallthru
          _
      $region79: #{tpu_custom_call.1} parent=5 // pred_fallthru
        _
    $region6: #{tpu_custom_call.1} parent=1 // loop_footer
      %s33 = sadd.s32 1, %s29
    $region7: #{tpu_custom_call.1} parent=1 // loop_footer_branch
      %28 = sbr.rel target = $region3
    $region8: #{tpu_custom_call.1} parent=1 // loop_exit
      _
    %1032 = vsyncpa [#allocation3], 1
    %s1033 = scalar_lea.sflag [#allocation3], 1
    %1034 = vsyncpa %s1033, 1
    %1035 = vsyncpa [#allocation6], 1
    %1036 = vsyncpa [#allocation4], 1
    %s1037 = scalar_lea.sflag [#allocation4], 1
    %1038 = vsyncpa %s1037, 1
    %1039 = vsyncpa [#allocation9], 1
    %s1040 = scalar_lea.sflag [#allocation9], 1
    %1041 = vsyncpa %s1040, 1
    %1042 = vsyncpa [#allocation12], 1
    %s1043 = scalar_lea.sflag [#allocation12], 1
    %1044 = vsyncpa %s1043, 1

</llo_original>
